<compile_context>
chip_gen: v6e
topology: v6e:2x2x1
jax: 0.10.0
libtpu: 0.0.40
codegen_flags: <defaults>
</compile_context>

<pallas_src>
import jax
import jax.numpy as jnp
import numpy as np
from jax.experimental import pallas as pl
from jax.experimental.pallas import tpu as pltpu

BOARD_X, BOARD_Y = 3, 3
NPOS = BOARD_X * BOARD_Y                    # 9 board positions
ACTION_SIZE = NPOS + 1                      # 10
HIDDEN = 512
C1, C2, C3 = 32, 64, 128
P1 = NPOS * C1                              # 288  (conv1 folded width)
P1P = 384                                   # padded to a multiple of 128
P2 = NPOS * C2                              # 576  (conv2 folded width)
P2P = 640                                   # padded to a multiple of 128
OUT_W = 128                                 # lane-dense output slab width


def _round_up(x, m):
    return ((x + m - 1) // m) * m


def _choose_tm(B):
    """Batch tile: >=16 (bf16 sublane packing); for big B keep >=2 grid steps (v7x)."""
    if B < 128:
        return _round_up(max(B, 1), 16)
    if B < 256:
        return 128
    tm = 512
    while tm > 128 and B < 2 * tm:          # keep the grid >= 2 steps
        tm //= 2
    return tm


# ----------------------------- Pallas kernel ------------------------------
def _fused_kernel(x_ref, w1_ref, b1_ref, w2_ref, b2_ref, w3_ref, b3_ref,
                  wfc_ref, bfc_ref, wh_ref, bh_ref, out_ref):
    bf = jnp.bfloat16
    x = x_ref[...].astype(bf)                                           # (TM, 9)

    # conv1 (3x3, pad=1) folded -> (TM, 384) [288 real + 96 zero-pad], layout (pos, c1)
    a = jnp.dot(x, w1_ref[...], preferred_element_type=jnp.float32) + b1_ref[...]
    a = jnp.maximum(a, 0.0).astype(bf)

    # conv2 (3x3, pad=1) folded -> (TM, 640) [576 real], layout (pos, c2)
    a = jnp.dot(a, w2_ref[...], preferred_element_type=jnp.float32) + b2_ref[...]
    a = jnp.maximum(a, 0.0).astype(bf)

    # conv3 (3x3, no pad -> 1x1 output) -> (TM, 128) == PyTorch flatten order
    a = jnp.dot(a, w3_ref[...], preferred_element_type=jnp.float32) + b3_ref[...]
    a = jnp.maximum(a, 0.0).astype(bf)

    # fc1 & fc2 fused into one (128, 1024) RHS -> (TM, 1024) = [pi_h | v_h]
    h = jnp.dot(a, wfc_ref[...], preferred_element_type=jnp.float32) + bfc_ref[...]
    h = jnp.maximum(h, 0.0).astype(bf)

    # policy + value heads fused into one lane-dense (1024, 128) RHS
    # cols 0..9 = policy logits, col 10 = raw value, cols 11..127 = 0
    z = jnp.dot(h, wh_ref[...], preferred_element_type=jnp.float32) + bh_ref[...]

    col = jax.lax.broadcasted_iota(jnp.int32, z.shape, 1)
    logits = jnp.where(col < ACTION_SIZE, z, jnp.float32(-1e30))
    m = jnp.max(logits, axis=1, keepdims=True)
    lse = m + jnp.log(jnp.sum(jnp.exp(logits - m), axis=1, keepdims=True))
    log_pi = logits - lse

    v_raw = jnp.sum(jnp.where(col == ACTION_SIZE, z, 0.0), axis=1, keepdims=True)
    v = jnp.tanh(v_raw)

    # single lane-dense (TM, 128) store: col 10 carries tanh(v)
    out_ref[...] = jnp.where(col == ACTION_SIZE, v, log_pi)


# ------------------------------ JAX wrapper --------------------------------
def tictactoe_forward(s, kp):
    """s: (B, 3, 3) board in {-1,0,1}.  kp: prepared (fused) kernel params."""
    B = s.shape[0]
    x = s.reshape(B, NPOS).astype(jnp.float32)

    TM = _choose_tm(B)
    Bp = _round_up(B, TM)
    if Bp != B:
        x = jnp.pad(x, ((0, Bp - B), (0, 0)))

    flops = 2 * Bp * (NPOS * P1P + P1P * P2P + P2P * C3
                      + C3 * 2 * HIDDEN + 2 * HIDDEN * OUT_W)
    w_bytes = sum(int(np.prod(v.shape)) * v.dtype.itemsize for v in kp.values())
    cost = pl.CostEstimate(
        flops=flops,
        transcendentals=Bp * (OUT_W + 2),
        bytes_accessed=w_bytes + Bp * NPOS * 4 + Bp * OUT_W * 4)

    grid_spec = pltpu.PrefetchScalarGridSpec(
        num_scalar_prefetch=0,
        grid=(Bp // TM,),
        in_specs=[
            pl.BlockSpec((TM, NPOS), lambda i: (i, 0)),          # board tile
            pl.BlockSpec((NPOS, P1P), lambda i: (0, 0)),         # conv1 (resident)
            pl.BlockSpec((1, P1P), lambda i: (0, 0)),
            pl.BlockSpec((P1P, P2P), lambda i: (0, 0)),          # conv2
            pl.BlockSpec((1, P2P), lambda i: (0, 0)),
            pl.BlockSpec((P2P, C3), lambda i: (0, 0)),           # conv3
            pl.BlockSpec((1, C3), lambda i: (0, 0)),
            pl.BlockSpec((C3, 2 * HIDDEN), lambda i: (0, 0)),    # fc1|fc2
            pl.BlockSpec((1, 2 * HIDDEN), lambda i: (0, 0)),
            pl.BlockSpec((2 * HIDDEN, OUT_W), lambda i: (0, 0)), # policy|value
            pl.BlockSpec((1, OUT_W), lambda i: (0, 0)),
        ],
        out_specs=pl.BlockSpec((TM, OUT_W), lambda i: (i, 0)),
    )

    out = pl.pallas_call(
        _fused_kernel,
        out_shape=jax.ShapeDtypeStruct((Bp, OUT_W), jnp.float32),
        grid_spec=grid_spec,
        compiler_params=pltpu.CompilerParams(
            dimension_semantics=("parallel",),
            vmem_limit_bytes=48 * 1024 * 1024),
        cost_estimate=cost,
    )(x, kp['w1'], kp['b1'], kp['w2'], kp['b2'], kp['w3'], kp['b3'],
      kp['wfc'], kp['bfc'], kp['wh'], kp['bh'])

    log_pi = out[:B, :ACTION_SIZE]
    v = out[:B, ACTION_SIZE:ACTION_SIZE + 1]
    return log_pi, v


# ---------------- parameter folding (done ONCE, outside the kernel) --------
def prepare_params(p):
    """Fold the PyTorch-layout weights into the fused/lane-dense kernel layout."""
    # G[o, t, pos] = 1 iff zero-padded 3x3 conv output position o, tap t reads
    # in-bounds board position pos (pad=1 convs on the 3x3 board).
    G = np.zeros((NPOS, NPOS, NPOS), np.float32)
    for oi in range(3):
        for oj in range(3):
            for ki in range(3):
                for kj in range(3):
                    ii, ij = oi + ki - 1, oj + kj - 1
                    if 0 <= ii < 3 and 0 <= ij < 3:
                        G[oi * 3 + oj, ki * 3 + kj, ii * 3 + ij] = 1.0
    G = jnp.asarray(G)

    # conv1: (32,1,3,3) -> (9, 288) -> zero-pad cols -> (9, 384)
    w1t = p['w_conv1'].reshape(C1, NPOS)
    W1 = jnp.einsum('otp,ct->poc', G, w1t).reshape(NPOS, P1)
    W1 = jnp.pad(W1, ((0, 0), (0, P1P - P1)))
    b1 = jnp.pad(jnp.tile(p['b_conv1'], NPOS), (0, P1P - P1))

    # conv2: (64,32,3,3) -> (288, 576) -> zero-pad rows/cols -> (384, 640)
    w2t = p['w_conv2'].reshape(C2, C1, NPOS)
    W2 = jnp.einsum('otp,dct->pcod', G, w2t).reshape(P1, P2)
    W2 = jnp.pad(W2, ((0, P1P - P1), (0, P2P - P2)))
    b2 = jnp.pad(jnp.tile(p['b_conv2'], NPOS), (0, P2P - P2))

    # conv3 (no pad, 1x1 output): (128,64,3,3) -> (576, 128) -> pad rows -> (640, 128)
    w3t = p['w_conv3'].reshape(C3, C2, NPOS)
    W3 = jnp.transpose(w3t, (2, 1, 0)).reshape(P2, C3)
    W3 = jnp.pad(W3, ((0, P2P - P2), (0, 0)))
    b3 = p['b_conv3']

    # fc1 | fc2 concatenated: (128, 1024)
    Wfc = jnp.concatenate([p['w_fc1'].T, p['w_fc2'].T], axis=1)
    bfc = jnp.concatenate([p['b_fc1'], p['b_fc2']])

    # policy (cols 0..9) + value (col 10) packed lane-dense: (1024, 128)
    Wh = jnp.zeros((2 * HIDDEN, OUT_W), jnp.float32)
    Wh = Wh.at[:HIDDEN, :ACTION_SIZE].set(p['w_policy'].T)
    Wh = Wh.at[HIDDEN:, ACTION_SIZE].set(p['w_value'][0])
    bh = jnp.zeros((OUT_W,), jnp.float32)
    bh = bh.at[:ACTION_SIZE].set(p['b_policy'])
    bh = bh.at[ACTION_SIZE].set(p['b_value'][0])

    bf, f32 = jnp.bfloat16, jnp.float32
    return {
        'w1': W1.astype(bf), 'b1': b1.reshape(1, -1).astype(f32),
        'w2': W2.astype(bf), 'b2': b2.reshape(1, -1).astype(f32),
        'w3': W3.astype(bf), 'b3': b3.reshape(1, -1).astype(f32),
        'wfc': Wfc.astype(bf), 'bfc': bfc.reshape(1, -1).astype(f32),
        'wh': Wh.astype(bf), 'bh': bh.reshape(1, -1).astype(f32),
    }


# ------------------ PyTorch-layout params & f32 reference ------------------
def init_params(key):
    ks = jax.random.split(key, 14)

    def w(k, shape, scale):
        return jax.random.normal(k, shape, jnp.float32) * scale

    return {
        'w_conv1': w(ks[0], (C1, 1, 3, 3), 0.2),   'b_conv1': w(ks[1], (C1,), 0.1),
        'w_conv2': w(ks[2], (C2, C1, 3, 3), 0.08), 'b_conv2': w(ks[3], (C2,), 0.05),
        'w_conv3': w(ks[4], (C3, C2, 3, 3), 0.05), 'b_conv3': w(ks[5], (C3,), 0.05),
        'w_fc1': w(ks[6], (HIDDEN, C3), 0.08),     'b_fc1': w(ks[7], (HIDDEN,), 0.05),
        'w_policy': w(ks[8], (ACTION_SIZE, HIDDEN), 0.05),
        'b_policy': w(ks[9], (ACTION_SIZE,), 0.05),
        'w_fc2': w(ks[10], (HIDDEN, C3), 0.08),    'b_fc2': w(ks[11], (HIDDEN,), 0.05),
        'w_value': w(ks[12], (1, HIDDEN), 0.05),   'b_value': w(ks[13], (1,), 0.05),
    }


def reference_forward(s, p):
    """Pure-JAX f32 replica of the PyTorch module (for a numerical sanity check)."""
    B = s.shape[0]
    x = s.reshape(B, 1, BOARD_X, BOARD_Y).astype(jnp.float32)

    def conv(x, w, b, pad):
        y = jax.lax.conv_general_dilated(
            x, w, window_strides=(1, 1), padding=[(pad, pad), (pad, pad)],
            dimension_numbers=('NCHW', 'OIHW', 'NCHW'))
        return jax.nn.relu(y + b.reshape(1, -1, 1, 1))

    x = conv(x, p['w_conv1'], p['b_conv1'], 1)
    x = conv(x, p['w_conv2'], p['b_conv2'], 1)
    x = conv(x, p['w_conv3'], p['b_conv3'], 0)
    flat = x.reshape(B, C3)
    pi_h = jax.nn.relu(flat @ p['w_fc1'].T + p['b_fc1'])
    log_pi = jax.nn.log_softmax(pi_h @ p['w_policy'].T + p['b_policy'], axis=1)
    v_h = jax.nn.relu(flat @ p['w_fc2'].T + p['b_fc2'])
    v = jnp.tanh(v_h @ p['w_value'].T + p['b_value'])
    return log_pi, v


if __name__ == "__main__":
    key = jax.random.PRNGKey(0)
    k_params, k_input = jax.random.split(key)
    params = init_params(k_params)
    kparams = prepare_params(params)          # one-time weight folding

    batch = 2
    s = jax.random.randint(k_input, (batch, BOARD_X, BOARD_Y), -1, 2).astype(jnp.float32)

    log_pi, v = jax.jit(tictactoe_forward)(s, kparams)
    jax.block_until_ready((log_pi, v))

    assert log_pi.shape == (batch, ACTION_SIZE)
    assert v.shape == (batch, 1)
    assert bool(jnp.all(jnp.isfinite(log_pi))) and bool(jnp.all(jnp.isfinite(v)))

    # loose tolerance: kernel runs bf16 matmuls with f32 accumulation
    ref_pi, ref_v = reference_forward(s, params)
    err_pi = float(jnp.max(jnp.abs(log_pi - ref_pi)))
    err_v = float(jnp.max(jnp.abs(v - ref_v)))
    assert err_pi < 0.1 and err_v < 0.05, (err_pi, err_v)

    # also exercise a large-batch tile choice (TM=256, 2 grid steps) once
    s_big = jax.random.randint(jax.random.PRNGKey(1), (512, BOARD_X, BOARD_Y), -1, 2
                               ).astype(jnp.float32)
    lp_big, v_big = jax.jit(tictactoe_forward)(s_big, kparams)
    jax.block_until_ready((lp_big, v_big))
    assert lp_big.shape == (512, ACTION_SIZE) and v_big.shape == (512, 1)

    print("KERNEL_OK")
</pallas_src>

<mosaic_0001>
module attributes {stable_mosaic.version = 11 : i64} {
  func.func @_fused_kernel(%arg0: i32, %arg1: memref<16x9xf32, #tpu.memory_space<vmem>>, %arg2: memref<9x384xbf16, #tpu.memory_space<vmem>>, %arg3: memref<1x384xf32, #tpu.memory_space<vmem>>, %arg4: memref<384x640xbf16, #tpu.memory_space<vmem>>, %arg5: memref<1x640xf32, #tpu.memory_space<vmem>>, %arg6: memref<640x128xbf16, #tpu.memory_space<vmem>>, %arg7: memref<1x128xf32, #tpu.memory_space<vmem>>, %arg8: memref<128x1024xbf16, #tpu.memory_space<vmem>>, %arg9: memref<1x1024xf32, #tpu.memory_space<vmem>>, %arg10: memref<1024x128xbf16, #tpu.memory_space<vmem>>, %arg11: memref<1x128xf32, #tpu.memory_space<vmem>>, %arg12: memref<16x128xf32, #tpu.memory_space<vmem>>) attributes {dimension_semantics = [#tpu.dimension_semantics<parallel>], iteration_bounds = array<i64: 1>, scalar_prefetch = 0 : i64, scratch_operands = 0 : i64, tpu.core_type = #tpu.core_type<tc>, window_params = [{transform_indices = @transform_0, window_bounds = array<i64: 16, 9>}, {pipeline_mode = #tpu.pipeline_mode<synchronous>, transform_indices = @transform_1, window_bounds = array<i64: 9, 384>}, {pipeline_mode = #tpu.pipeline_mode<synchronous>, transform_indices = @transform_2, window_bounds = array<i64: 1, 384>}, {pipeline_mode = #tpu.pipeline_mode<synchronous>, transform_indices = @transform_3, window_bounds = array<i64: 384, 640>}, {pipeline_mode = #tpu.pipeline_mode<synchronous>, transform_indices = @transform_4, window_bounds = array<i64: 1, 640>}, {pipeline_mode = #tpu.pipeline_mode<synchronous>, transform_indices = @transform_5, window_bounds = array<i64: 640, 128>}, {pipeline_mode = #tpu.pipeline_mode<synchronous>, transform_indices = @transform_6, window_bounds = array<i64: 1, 128>}, {pipeline_mode = #tpu.pipeline_mode<synchronous>, transform_indices = @transform_7, window_bounds = array<i64: 128, 1024>}, {pipeline_mode = #tpu.pipeline_mode<synchronous>, transform_indices = @transform_8, window_bounds = array<i64: 1, 1024>}, {pipeline_mode = #tpu.pipeline_mode<synchronous>, transform_indices = @transform_9, window_bounds = array<i64: 1024, 128>}, {pipeline_mode = #tpu.pipeline_mode<synchronous>, transform_indices = @transform_10, window_bounds = array<i64: 1, 128>}, {transform_indices = @transform_11, window_bounds = array<i64: 16, 128>}]} {
    %c0 = arith.constant 0 : index
    %c0_0 = arith.constant 0 : index
    %0 = vector.load %arg1[%c0, %c0_0] : memref<16x9xf32, #tpu.memory_space<vmem>>, vector<16x9xf32>
    %1 = arith.truncf %0 : vector<16x9xf32> to vector<16x9xbf16>
    %c0_1 = arith.constant 0 : index
    %c0_2 = arith.constant 0 : index
    %2 = vector.load %arg2[%c0_1, %c0_2] : memref<9x384xbf16, #tpu.memory_space<vmem>>, vector<9x384xbf16>
    %cst = arith.constant dense<0.000000e+00> : vector<16x384xf32>
    %3 = tpu.matmul %1, %2, %cst {dimension_numbers = #tpu.dot_dimension_numbers<[1], [0], [0], [1], [0, 0, 1, 1], [], []>} : vector<16x9xbf16>, vector<9x384xbf16>, vector<16x384xf32> -> vector<16x384xf32>
    %c0_3 = arith.constant 0 : index
    %c0_4 = arith.constant 0 : index
    %4 = vector.load %arg3[%c0_3, %c0_4] : memref<1x384xf32, #tpu.memory_space<vmem>>, vector<1x384xf32>
    %5 = vector.broadcast %4 : vector<1x384xf32> to vector<16x384xf32>
    %6 = arith.addf %3, %5 : vector<16x384xf32>
    %cst_5 = arith.constant 0.000000e+00 : f32
    %7 = vector.broadcast %cst_5 : f32 to vector<16x384xf32>
    %8 = arith.maximumf %6, %7 : vector<16x384xf32>
    %9 = arith.truncf %8 : vector<16x384xf32> to vector<16x384xbf16>
    %c0_6 = arith.constant 0 : index
    %c0_7 = arith.constant 0 : index
    %10 = vector.load %arg4[%c0_6, %c0_7] : memref<384x640xbf16, #tpu.memory_space<vmem>>, vector<384x640xbf16>
    %cst_8 = arith.constant dense<0.000000e+00> : vector<16x640xf32>
    %11 = tpu.matmul %9, %10, %cst_8 {dimension_numbers = #tpu.dot_dimension_numbers<[1], [0], [0], [1], [0, 0, 1, 1], [], []>} : vector<16x384xbf16>, vector<384x640xbf16>, vector<16x640xf32> -> vector<16x640xf32>
    %c0_9 = arith.constant 0 : index
    %c0_10 = arith.constant 0 : index
    %12 = vector.load %arg5[%c0_9, %c0_10] : memref<1x640xf32, #tpu.memory_space<vmem>>, vector<1x640xf32>
    %13 = vector.broadcast %12 : vector<1x640xf32> to vector<16x640xf32>
    %14 = arith.addf %11, %13 : vector<16x640xf32>
    %cst_11 = arith.constant 0.000000e+00 : f32
    %15 = vector.broadcast %cst_11 : f32 to vector<16x640xf32>
    %16 = arith.maximumf %14, %15 : vector<16x640xf32>
    %17 = arith.truncf %16 : vector<16x640xf32> to vector<16x640xbf16>
    %c0_12 = arith.constant 0 : index
    %c0_13 = arith.constant 0 : index
    %18 = vector.load %arg6[%c0_12, %c0_13] : memref<640x128xbf16, #tpu.memory_space<vmem>>, vector<640x128xbf16>
    %cst_14 = arith.constant dense<0.000000e+00> : vector<16x128xf32>
    %19 = tpu.matmul %17, %18, %cst_14 {dimension_numbers = #tpu.dot_dimension_numbers<[1], [0], [0], [1], [0, 0, 1, 1], [], []>} : vector<16x640xbf16>, vector<640x128xbf16>, vector<16x128xf32> -> vector<16x128xf32>
    %c0_15 = arith.constant 0 : index
    %c0_16 = arith.constant 0 : index
    %20 = vector.load %arg7[%c0_15, %c0_16] : memref<1x128xf32, #tpu.memory_space<vmem>>, vector<1x128xf32>
    %21 = vector.broadcast %20 : vector<1x128xf32> to vector<16x128xf32>
    %22 = arith.addf %19, %21 : vector<16x128xf32>
    %cst_17 = arith.constant 0.000000e+00 : f32
    %23 = vector.broadcast %cst_17 : f32 to vector<16x128xf32>
    %24 = arith.maximumf %22, %23 : vector<16x128xf32>
    %25 = arith.truncf %24 : vector<16x128xf32> to vector<16x128xbf16>
    %c0_18 = arith.constant 0 : index
    %c0_19 = arith.constant 0 : index
    %26 = vector.load %arg8[%c0_18, %c0_19] : memref<128x1024xbf16, #tpu.memory_space<vmem>>, vector<128x1024xbf16>
    %cst_20 = arith.constant dense<0.000000e+00> : vector<16x1024xf32>
    %27 = tpu.matmul %25, %26, %cst_20 {dimension_numbers = #tpu.dot_dimension_numbers<[1], [0], [0], [1], [0, 0, 1, 1], [], []>} : vector<16x128xbf16>, vector<128x1024xbf16>, vector<16x1024xf32> -> vector<16x1024xf32>
    %c0_21 = arith.constant 0 : index
    %c0_22 = arith.constant 0 : index
    %28 = vector.load %arg9[%c0_21, %c0_22] : memref<1x1024xf32, #tpu.memory_space<vmem>>, vector<1x1024xf32>
    %29 = vector.broadcast %28 : vector<1x1024xf32> to vector<16x1024xf32>
    %30 = arith.addf %27, %29 : vector<16x1024xf32>
    %cst_23 = arith.constant 0.000000e+00 : f32
    %31 = vector.broadcast %cst_23 : f32 to vector<16x1024xf32>
    %32 = arith.maximumf %30, %31 : vector<16x1024xf32>
    %33 = arith.truncf %32 : vector<16x1024xf32> to vector<16x1024xbf16>
    %c0_24 = arith.constant 0 : index
    %c0_25 = arith.constant 0 : index
    %34 = vector.load %arg10[%c0_24, %c0_25] : memref<1024x128xbf16, #tpu.memory_space<vmem>>, vector<1024x128xbf16>
    %cst_26 = arith.constant dense<0.000000e+00> : vector<16x128xf32>
    %35 = tpu.matmul %33, %34, %cst_26 {dimension_numbers = #tpu.dot_dimension_numbers<[1], [0], [0], [1], [0, 0, 1, 1], [], []>} : vector<16x1024xbf16>, vector<1024x128xbf16>, vector<16x128xf32> -> vector<16x128xf32>
    %c0_27 = arith.constant 0 : index
    %c0_28 = arith.constant 0 : index
    %36 = vector.load %arg11[%c0_27, %c0_28] : memref<1x128xf32, #tpu.memory_space<vmem>>, vector<1x128xf32>
    %37 = vector.broadcast %36 : vector<1x128xf32> to vector<16x128xf32>
    %38 = arith.addf %35, %37 : vector<16x128xf32>
    %39 = tpu.iota {dimensions = array<i32: 1>} : vector<16x128xi32>
    %c10_i32 = arith.constant 10 : i32
    %40 = vector.broadcast %c10_i32 : i32 to vector<16x128xi32>
    %41 = arith.cmpi slt, %39, %40 : vector<16x128xi32>
    %cst_29 = arith.constant -1.000000e+30 : f32
    %42 = vector.broadcast %cst_29 : f32 to vector<16x128xf32>
    %43 = arith.select %41, %38, %42 : vector<16x128xi1>, vector<16x128xf32>
    %cst_30 = arith.constant dense<0xFF800000> : vector<16xf32>
    %44 = vector.multi_reduction <maximumf>, %43, %cst_30 [1] : vector<16x128xf32> to vector<16xf32>
    %45 = vector.shape_cast %44 : vector<16xf32> to vector<16x1xf32>
    %46 = vector.broadcast %45 : vector<16x1xf32> to vector<16x128xf32>
    %47 = arith.subf %43, %46 : vector<16x128xf32>
    %48 = math.exp %47 : vector<16x128xf32>
    %cst_31 = arith.constant dense<0.000000e+00> : vector<16xf32>
    %49 = vector.multi_reduction <add>, %48, %cst_31 [1] : vector<16x128xf32> to vector<16xf32>
    %50 = vector.shape_cast %49 : vector<16xf32> to vector<16x1xf32>
    %51 = math.log %50 : vector<16x1xf32>
    %52 = arith.addf %45, %51 : vector<16x1xf32>
    %53 = vector.broadcast %52 : vector<16x1xf32> to vector<16x128xf32>
    %54 = arith.subf %43, %53 : vector<16x128xf32>
    %c10_i32_32 = arith.constant 10 : i32
    %55 = vector.broadcast %c10_i32_32 : i32 to vector<16x128xi32>
    %56 = arith.cmpi eq, %39, %55 : vector<16x128xi32>
    %cst_33 = arith.constant 0.000000e+00 : f32
    %57 = vector.broadcast %cst_33 : f32 to vector<16x128xf32>
    %58 = arith.select %56, %38, %57 : vector<16x128xi1>, vector<16x128xf32>
    %cst_34 = arith.constant dense<0.000000e+00> : vector<16xf32>
    %59 = vector.multi_reduction <add>, %58, %cst_34 [1] : vector<16x128xf32> to vector<16xf32>
    %60 = vector.shape_cast %59 : vector<16xf32> to vector<16x1xf32>
    %61 = math.tanh %60 : vector<16x1xf32>
    %c10_i32_35 = arith.constant 10 : i32
    %62 = vector.broadcast %c10_i32_35 : i32 to vector<16x128xi32>
    %63 = arith.cmpi eq, %39, %62 : vector<16x128xi32>
    %64 = vector.shape_cast %61 : vector<16x1xf32> to vector<16x1xf32>
    %65 = vector.broadcast %64 : vector<16x1xf32> to vector<16x128xf32>
    %66 = arith.select %63, %65, %54 : vector<16x128xi1>, vector<16x128xf32>
    %c0_36 = arith.constant 0 : index
    %c0_37 = arith.constant 0 : index
    %67 = vector.load %arg12[%c0_36, %c0_37] : memref<16x128xf32, #tpu.memory_space<vmem>>, vector<16x128xf32>
    tpu.vector_store %arg12[%c0_36, %c0_37], %66 {strides = array<i32>} : memref<16x128xf32, #tpu.memory_space<vmem>>, vector<16x128xf32>,
    return
  }
  func.func @transform_0(%arg0: i32) -> (i32, i32) {
    %c0_i32 = arith.constant 0 : i32
    %c0_i32_0 = arith.constant 0 : i32
    return %arg0, %c0_i32 : i32, i32
  }
  func.func @transform_1(%arg0: i32) -> (i32, i32) {
    %c0_i32 = arith.constant 0 : i32
    %c0_i32_0 = arith.constant 0 : i32
    %c0_i32_1 = arith.constant 0 : i32
    return %c0_i32, %c0_i32_0 : i32, i32
  }
  func.func @transform_2(%arg0: i32) -> (i32, i32) {
    %c0_i32 = arith.constant 0 : i32
    %c0_i32_0 = arith.constant 0 : i32
    %c0_i32_1 = arith.constant 0 : i32
    return %c0_i32, %c0_i32_0 : i32, i32
  }
  func.func @transform_3(%arg0: i32) -> (i32, i32) {
    %c0_i32 = arith.constant 0 : i32
    %c0_i32_0 = arith.constant 0 : i32
    %c0_i32_1 = arith.constant 0 : i32
    return %c0_i32, %c0_i32_0 : i32, i32
  }
  func.func @transform_4(%arg0: i32) -> (i32, i32) {
    %c0_i32 = arith.constant 0 : i32
    %c0_i32_0 = arith.constant 0 : i32
    %c0_i32_1 = arith.constant 0 : i32
    return %c0_i32, %c0_i32_0 : i32, i32
  }
  func.func @transform_5(%arg0: i32) -> (i32, i32) {
    %c0_i32 = arith.constant 0 : i32
    %c0_i32_0 = arith.constant 0 : i32
    %c0_i32_1 = arith.constant 0 : i32
    return %c0_i32, %c0_i32_0 : i32, i32
  }
  func.func @transform_6(%arg0: i32) -> (i32, i32) {
    %c0_i32 = arith.constant 0 : i32
    %c0_i32_0 = arith.constant 0 : i32
    %c0_i32_1 = arith.constant 0 : i32
    return %c0_i32, %c0_i32_0 : i32, i32
  }
  func.func @transform_7(%arg0: i32) -> (i32, i32) {
    %c0_i32 = arith.constant 0 : i32
    %c0_i32_0 = arith.constant 0 : i32
    %c0_i32_1 = arith.constant 0 : i32
    return %c0_i32, %c0_i32_0 : i32, i32
  }
  func.func @transform_8(%arg0: i32) -> (i32, i32) {
    %c0_i32 = arith.constant 0 : i32
    %c0_i32_0 = arith.constant 0 : i32
    %c0_i32_1 = arith.constant 0 : i32
    return %c0_i32, %c0_i32_0 : i32, i32
  }
  func.func @transform_9(%arg0: i32) -> (i32, i32) {
    %c0_i32 = arith.constant 0 : i32
    %c0_i32_0 = arith.constant 0 : i32
    %c0_i32_1 = arith.constant 0 : i32
    return %c0_i32, %c0_i32_0 : i32, i32
  }
  func.func @transform_10(%arg0: i32) -> (i32, i32) {
    %c0_i32 = arith.constant 0 : i32
    %c0_i32_0 = arith.constant 0 : i32
    %c0_i32_1 = arith.constant 0 : i32
    return %c0_i32, %c0_i32_0 : i32, i32
  }
  func.func @transform_11(%arg0: i32) -> (i32, i32) {
    %c0_i32 = arith.constant 0 : i32
    %c0_i32_0 = arith.constant 0 : i32
    return %arg0, %c0_i32 : i32, i32
  }
}

</mosaic_0001>

<llo_original>
// kernel: tictactoe_forward.1
$region0: #{tictactoe_forward.1}
  #allocation0 [shape = 'u32[]', space=smem, size = 0x4, offset = 0x4, fixed_abs, tag = 'smem constant byte address 0x4 - core index']
  #allocation1 [shape = 'u32[144,128]{1,0:T(1,128)}', space=vmem, size = 0x12000, scoped, tag = 'internal scratch']
  %s0 = inlined_call_operand.vmem [shape: f32[16,9], index: 0, kind: input, shape index: {}]
  %s1 = inlined_call_operand.vmem [shape: bf16[9,384], index: 1, kind: input, shape index: {}]
  %s2 = inlined_call_operand.vmem [shape: f32[1,384], index: 2, kind: input, shape index: {}]
  %s3 = inlined_call_operand.hbm [shape: bf16[384,640], index: 3, kind: input, shape index: {}]
  %s4 = inlined_call_operand.vmem [shape: f32[1,640], index: 4, kind: input, shape index: {}]
  %s5 = inlined_call_operand.hbm [shape: bf16[640,128], index: 5, kind: input, shape index: {}]
  %s6 = inlined_call_operand.vmem [shape: f32[1,128], index: 6, kind: input, shape index: {}]
  %s7 = inlined_call_operand.hbm [shape: bf16[128,1024], index: 7, kind: input, shape index: {}]
  %s8 = inlined_call_operand.vmem [shape: f32[1,1024], index: 8, kind: input, shape index: {}]
  %s9 = inlined_call_operand.hbm [shape: bf16[1024,128], index: 9, kind: input, shape index: {}]
  %s10 = inlined_call_operand.vmem [shape: f32[1,128], index: 10, kind: input, shape index: {}]
  %s11 = inlined_call_operand.vmem [shape: f32[16,128], index: 11, kind: output, shape index: {}]
  %s12 = sld [smem:[#allocation0]]
  $region70: #{tictactoe_forward.1} parent=0
    _
  %s14 = ssub.s32 1, %s12
  %s15 = scalar_select 0, %s14, %s12
  $region1: #{tictactoe_forward.1} parent=0
    #allocation2 [shape = 'u8[491520]{0}', space=vmem, size = 0x78000, scoped, tag = 'input window, operand 3, single buffered']
    #allocation3 [shape = 's32[1]{0}', space=sflag, size = 0x4, scoped, tag = 'scoped memory for tictactoe_forward.1']
    #allocation4 [shape = 'u8[163840]{0}', space=vmem, size = 0x28000, scoped, tag = 'input window, operand 5, single buffered']
    #allocation5 [shape = 's32[1]{0}', space=sflag, size = 0x4, scoped, tag = 'scoped memory for tictactoe_forward.1']
    #allocation6 [shape = 'u8[262144]{0}', space=vmem, size = 0x40000, scoped, tag = 'input window, operand 7, single buffered']
    #allocation7 [shape = 'u8[262144]{0}', space=vmem, size = 0x40000, scoped, tag = 'input window, operand 9, single buffered']
    #allocation8 [shape = 's32[1]{0}', space=sflag, size = 0x4, scoped, tag = 'scoped memory for tictactoe_forward.1']
    %16 = vsyncpa [#allocation3], 0
    %17 = vsyncpa [#allocation5], 0
    %18 = vsyncpa [#allocation8], 0
    // Predicated region
    $region2: #{tictactoe_forward.1} parent=1 // pred_check
      _
    $region3: #{tictactoe_forward.1} parent=1 // pred_check_branch
      %20 = sbr.rel (0) target = $region5
    $region4: #{tictactoe_forward.1} parent=1 // pred_region
      _
    $region5: #{tictactoe_forward.1} parent=1 // pred_fallthru
      _
    // Predicated region
    $region6: #{tictactoe_forward.1} parent=1 // pred_check
      _
    $region7: #{tictactoe_forward.1} parent=1 // pred_check_branch
      %22 = sbr.rel (0) target = $region9
    $region8: #{tictactoe_forward.1} parent=1 // pred_region
      _
    $region9: #{tictactoe_forward.1} parent=1 // pred_fallthru
      _
    // Predicated region
    $region10: #{tictactoe_forward.1} parent=1 // pred_check
      _
    $region11: #{tictactoe_forward.1} parent=1 // pred_check_branch
      %24 = sbr.rel (0) target = $region13
    $region12: #{tictactoe_forward.1} parent=1 // pred_region
      _
    $region13: #{tictactoe_forward.1} parent=1 // pred_fallthru
      _
    // Predicated region
    $region14: #{tictactoe_forward.1} parent=1 // pred_check
      _
    $region15: #{tictactoe_forward.1} parent=1 // pred_check_branch
      %26 = sbr.rel (0) target = $region17
    $region16: #{tictactoe_forward.1} parent=1 // pred_region
      %s28 = ssub.s32 15360, 15360
      %29 = vsyncadd [#allocation3], %s28
      %s30 = sshll.u32 [#allocation2], 4
      %s31 = int_to_ptr.vmem [resolvable:$true] %s30
      %36 = dma.hbm_to_vmem [thread:$0]  %s3, 15360, %s31, [#allocation3], 320, 320, 20
    $region17: #{tictactoe_forward.1} parent=1 // pred_fallthru
      _
    // Predicated region
    $region18: #{tictactoe_forward.1} parent=1 // pred_check
      _
    $region19: #{tictactoe_forward.1} parent=1 // pred_check_branch
      %38 = sbr.rel (0) target = $region21
    $region20: #{tictactoe_forward.1} parent=1 // pred_region
      _
    $region21: #{tictactoe_forward.1} parent=1 // pred_fallthru
      _
    // Predicated region
    $region22: #{tictactoe_forward.1} parent=1 // pred_check
      _
    $region23: #{tictactoe_forward.1} parent=1 // pred_check_branch
      %40 = sbr.rel (0) target = $region25
    $region24: #{tictactoe_forward.1} parent=1 // pred_region
      %s42 = ssub.s32 5120, 5120
      %43 = vsyncadd [#allocation5], %s42
      %s44 = sshll.u32 [#allocation4], 4
      %s45 = int_to_ptr.vmem [resolvable:$true] %s44
      %50 = dma.hbm_to_vmem [thread:$0]  %s5, 5120, %s45, [#allocation5], 64, 64, 4
    $region25: #{tictactoe_forward.1} parent=1 // pred_fallthru
      _
    // Predicated region
    $region26: #{tictactoe_forward.1} parent=1 // pred_check
      _
    $region27: #{tictactoe_forward.1} parent=1 // pred_check_branch
      %52 = sbr.rel (0) target = $region29
    $region28: #{tictactoe_forward.1} parent=1 // pred_region
      _
    $region29: #{tictactoe_forward.1} parent=1 // pred_fallthru
      _
    // Predicated region
    $region30: #{tictactoe_forward.1} parent=1 // pred_check
      _
    $region31: #{tictactoe_forward.1} parent=1 // pred_check_branch
      %54 = sbr.rel (0) target = $region33
    $region32: #{tictactoe_forward.1} parent=1 // pred_region
      %s56 = ssub.s32 8192, 8192
      %57 = vsyncadd [#allocation5], %s56
      %s58 = sshll.u32 [#allocation6], 4
      %s59 = int_to_ptr.vmem [resolvable:$true] %s58
      %64 = dma.hbm_to_vmem [thread:$0]  %s7, 8192, %s59, [#allocation5], 512, 512, 32
    $region33: #{tictactoe_forward.1} parent=1 // pred_fallthru
      _
    // Predicated region
    $region34: #{tictactoe_forward.1} parent=1 // pred_check
      _
    $region35: #{tictactoe_forward.1} parent=1 // pred_check_branch
      %66 = sbr.rel (0) target = $region37
    $region36: #{tictactoe_forward.1} parent=1 // pred_region
      _
    $region37: #{tictactoe_forward.1} parent=1 // pred_fallthru
      _
    // Predicated region
    $region38: #{tictactoe_forward.1} parent=1 // pred_check
      _
    $region39: #{tictactoe_forward.1} parent=1 // pred_check_branch
      %68 = sbr.rel (0) target = $region41
    $region40: #{tictactoe_forward.1} parent=1 // pred_region
      %s70 = ssub.s32 8192, 8192
      %71 = vsyncadd [#allocation8], %s70
      %s72 = sshll.u32 [#allocation7], 4
      %s73 = int_to_ptr.vmem [resolvable:$true] %s72
      %78 = dma.hbm_to_vmem [thread:$0]  %s9, 8192, %s73, [#allocation8], 64, 64, 4
    $region41: #{tictactoe_forward.1} parent=1 // pred_fallthru
      _
    // Predicated region
    $region42: #{tictactoe_forward.1} parent=1 // pred_check
      _
    $region43: #{tictactoe_forward.1} parent=1 // pred_check_branch
      %80 = sbr.rel (0) target = $region45
    $region44: #{tictactoe_forward.1} parent=1 // pred_region
      _
    $region45: #{tictactoe_forward.1} parent=1 // pred_fallthru
      _
    // Predicated region
    $region46: #{tictactoe_forward.1} parent=1 // pred_check
      _
    $region47: #{tictactoe_forward.1} parent=1 // pred_check_branch
      %82 = sbr.rel (0) target = $region49
    $region48: #{tictactoe_forward.1} parent=1 // pred_region
      %83 = dma.done [#allocation3], 15360
    $region49: #{tictactoe_forward.1} parent=1 // pred_fallthru
      _
    // Predicated region
    $region50: #{tictactoe_forward.1} parent=1 // pred_check
      _
    $region51: #{tictactoe_forward.1} parent=1 // pred_check_branch
      %85 = sbr.rel (0) target = $region53
    $region52: #{tictactoe_forward.1} parent=1 // pred_region
      %86 = dma.done [#allocation5], 5120
    $region53: #{tictactoe_forward.1} parent=1 // pred_fallthru
      _
    // Predicated region
    $region54: #{tictactoe_forward.1} parent=1 // pred_check
      _
    $region55: #{tictactoe_forward.1} parent=1 // pred_check_branch
      %88 = sbr.rel (0) target = $region57
    $region56: #{tictactoe_forward.1} parent=1 // pred_region
      %89 = dma.done [#allocation5], 8192
    $region57: #{tictactoe_forward.1} parent=1 // pred_fallthru
      _
    // Predicated region
    $region58: #{tictactoe_forward.1} parent=1 // pred_check
      _
    $region59: #{tictactoe_forward.1} parent=1 // pred_check_branch
      %91 = sbr.rel (0) target = $region61
    $region60: #{tictactoe_forward.1} parent=1 // pred_region
      %92 = dma.done [#allocation8], 8192
    $region61: #{tictactoe_forward.1} parent=1 // pred_fallthru
      _
    %v94 = vld [vmem:[%s0] sm:$0xff]
    %v95 = vld [vmem:[%s0 + $0x8] sm:$0xff]
    %v96 = vpack.c.bf16 %v95, %v94
    %v97 = vld [vmem:[%s1] sm:$0xff]
    %v98 = vld [vmem:[%s1 + $0x8] sm:$0xf]
    %v99 = vld [vmem:[%s1 + $0xc] sm:$0x11]
    %v100 = vld [vmem:[%s1 + $0x14] sm:$0x1]
    %v101 = vld [vmem:[%s2] sm:$0x7]
    %v103 = vlaneseq
    %v104 = vshrl.u32 %v103, 7
    %v105 = vsub.s32 0, %v104
    %v106 = vrot.slane %v101, %v105
    %v107 = vlaneseq
    %v108 = vshrl.u32 %v107, 7
    %v109 = vsub.s32 1, %v108
    %v110 = vrot.slane %v101, %v109
    %v111 = vlaneseq
    %v112 = vshrl.u32 %v111, 7
    %v113 = vsub.s32 2, %v112
    %v114 = vrot.slane %v101, %v113
    %v122 = vunpack.c.l.b16 %v97
    %v123 = vunpack.c.h.b16 %v97
    %v124 = vunpack.c.l.b16 %v98
    %v125 = vunpack.c.l.b16 %v99
    %v126 = vunpack.c.h.b16 %v99
    %v127 = vunpack.c.l.b16 %v100
    %v128 = vpack.c.b16 %v125, %v122
    %v129 = vpack.c.b16 %v126, %v123
    %v130 = vpack.c.b16 %v127, %v124
    %vm131 = vcmask 72704
    %v133 = vsel %vm131, %v96, 0
    %vm135 = vcmask 1043456
    %vm136 = vcmask 1044480
    %v137 = vsel %vm135, 4294967295, 65535
    %v138 = vsel %vm136, %v137, 0
    %v140 = vand.u32 %v128, %v138
    %v143 = vand.u32 %v129, %v138
    %v146 = vand.u32 %v130, %v138
    %148 = vmatprep.subr.bf16.mxu0 0
    %149 = vmatpush1.bf16.msra.mxu0 0
    %150 = vmatprep.subr.bf16.mxu0 0
    %151 = vmatpush1.bf16.msra.mxu0 0
    %152 = vmatprep.subr.bf16.mxu0 0
    %153 = vmatpush1.bf16.msra.mxu0 0
    %154 = vmatprep.subr.bf16.mxu0 0
    %155 = vmatpush1.bf16.msra.mxu0 0
    %156 = vmatprep.subr.bf16.mxu0 0
    %157 = vmatpush1.bf16.msra.mxu0 0
    %158 = vmatprep.subr.bf16.mxu0 0
    %159 = vmatpush1.bf16.msra.mxu0 0
    %160 = vmatprep.subr.bf16.mxu0 0
    %161 = vmatpush1.bf16.msra.mxu0 0
    %162 = vmatprep.subr.bf16.mxu0 %v143
    %163 = vmatpush1.bf16.msra.mxu0 %v140
    %164 = vmatprep.subr.bf16.mxu0 0
    %165 = vmatpush2.bf16.msra.mxu0 0
    %166 = vmatprep.subr.bf16.mxu0 0
    %167 = vmatpush2.bf16.msra.mxu0 0
    %168 = vmatprep.subr.bf16.mxu0 0
    %169 = vmatpush2.bf16.msra.mxu0 0
    %170 = vmatprep.subr.bf16.mxu0 0
    %171 = vmatpush2.bf16.msra.mxu0 0
    %172 = vmatprep.subr.bf16.mxu0 0
    %173 = vmatpush2.bf16.msra.mxu0 0
    %174 = vmatprep.subr.bf16.mxu0 0
    %175 = vmatpush2.bf16.msra.mxu0 0
    %176 = vmatprep.subr.bf16.mxu0 0
    %177 = vmatpush2.bf16.msra.mxu0 0
    %178 = vmatprep.subr.bf16.mxu0 0
    %179 = vmatpush2.bf16.msra.mxu0 0
    %180 = vmatprep.mubr.bf16.mxu0 0
    %181 = vmatmul.mubr.bf16.gmra.mxu0 %v133
    %v182 = vpop.f32.mrf.mxu0
    %v183 = vadd.f32 %v106, %v182
    %v184 = vpop.f32.mrf.mxu0
    %v185 = vadd.f32 %v110, %v184
    %v186 = vpop.f32.mrf.mxu0
    %v187 = vadd.f32 %v106, %v186
    %v188 = vpop.f32.mrf.mxu0
    %v189 = vadd.f32 %v110, %v188
    %190 = vdwg.mxu0
    %191 = vmatprep.subr.bf16.mxu0 0
    %192 = vmatpush1.bf16.msra.mxu0 0
    %193 = vmatprep.subr.bf16.mxu0 0
    %194 = vmatpush1.bf16.msra.mxu0 0
    %195 = vmatprep.subr.bf16.mxu0 0
    %196 = vmatpush1.bf16.msra.mxu0 0
    %197 = vmatprep.subr.bf16.mxu0 0
    %198 = vmatpush1.bf16.msra.mxu0 0
    %199 = vmatprep.subr.bf16.mxu0 0
    %200 = vmatpush1.bf16.msra.mxu0 0
    %201 = vmatprep.subr.bf16.mxu0 0
    %202 = vmatpush1.bf16.msra.mxu0 0
    %203 = vmatprep.subr.bf16.mxu0 0
    %204 = vmatpush1.bf16.msra.mxu0 0
    %205 = vmatprep.subr.bf16.mxu0 0
    %206 = vmatpush1.bf16.msra.mxu0 %v146
    %207 = vmatprep.subr.bf16.mxu0 0
    %208 = vmatpush2.bf16.msra.mxu0 0
    %209 = vmatprep.subr.bf16.mxu0 0
    %210 = vmatpush2.bf16.msra.mxu0 0
    %211 = vmatprep.subr.bf16.mxu0 0
    %212 = vmatpush2.bf16.msra.mxu0 0
    %213 = vmatprep.subr.bf16.mxu0 0
    %214 = vmatpush2.bf16.msra.mxu0 0
    %215 = vmatprep.subr.bf16.mxu0 0
    %216 = vmatpush2.bf16.msra.mxu0 0
    %217 = vmatprep.subr.bf16.mxu0 0
    %218 = vmatpush2.bf16.msra.mxu0 0
    %219 = vmatprep.subr.bf16.mxu0 0
    %220 = vmatpush2.bf16.msra.mxu0 0
    %221 = vmatprep.subr.bf16.mxu0 0
    %222 = vmatpush2.bf16.msra.mxu0 0
    %223 = vmatprep.mubr.bf16.mxu0 0
    %224 = vmatmul.mubr.bf16.gmra.mxu0 %v133
    %v225 = vpop.f32.mrf.mxu0
    %v226 = vadd.f32 %v114, %v225
    %v227 = vpop.f32.mrf.mxu0
    %v228 = vpop.f32.mrf.mxu0
    %v229 = vadd.f32 %v114, %v228
    %v230 = vpop.f32.mrf.mxu0
    %231 = vdwg.mxu0
    %v232 = vmax.f32 %v183, 0.0
    %v233 = vmax.f32 %v185, 0.0
    %v234 = vmax.f32 %v226, 0.0
    %v235 = vmax.f32 %v187, 0.0
    %v236 = vmax.f32 %v189, 0.0
    %v237 = vmax.f32 %v229, 0.0
    %v238 = vpack.c.bf16 %v235, %v232
    %v239 = vpack.c.bf16 %v236, %v233
    %v240 = vpack.c.bf16 %v237, %v234
    %v241 = vld [vmem:[#allocation2] sm:$0xff]
    %v242 = vld [vmem:[#allocation2 + $0x8] sm:$0xff]
    %v243 = vld [vmem:[#allocation2 + $0x10] sm:$0xf]
    %v244 = vld [vmem:[#allocation2 + $0x14] sm:$0xff]
    %v245 = vld [vmem:[#allocation2 + $0x1c] sm:$0xff]
    %v246 = vld [vmem:[#allocation2 + $0x24] sm:$0xf]
    %v247 = vld [vmem:[#allocation2 + $0x28] sm:$0xff]
    %v248 = vld [vmem:[#allocation2 + $0x30] sm:$0xff]
    %v249 = vld [vmem:[#allocation2 + $0x38] sm:$0xf]
    %v250 = vld [vmem:[#allocation2 + $0x3c] sm:$0xff]
    %v251 = vld [vmem:[#allocation2 + $0x44] sm:$0xff]
    %v252 = vld [vmem:[#allocation2 + $0x4c] sm:$0xf]
    %v253 = vld [vmem:[#allocation2 + $0x50] sm:$0xff]
    %v254 = vld [vmem:[#allocation2 + $0x58] sm:$0xff]
    %v255 = vld [vmem:[#allocation2 + $0x60] sm:$0xf]
    %v256 = vld [vmem:[#allocation2 + $0x64] sm:$0xff]
    %v257 = vld [vmem:[#allocation2 + $0x6c] sm:$0xff]
    %v258 = vld [vmem:[#allocation2 + $0x74] sm:$0xf]
    %v259 = vld [vmem:[#allocation2 + $0x78] sm:$0xff]
    %v260 = vld [vmem:[#allocation2 + $0x80] sm:$0xff]
    %v261 = vld [vmem:[#allocation2 + $0x88] sm:$0xf]
    %v262 = vld [vmem:[#allocation2 + $0x8c] sm:$0xff]
    %v263 = vld [vmem:[#allocation2 + $0x94] sm:$0xff]
    %v264 = vld [vmem:[#allocation2 + $0x9c] sm:$0xf]
    %v265 = vld [vmem:[#allocation2 + $0xa0] sm:$0xff]
    %v266 = vld [vmem:[#allocation2 + $0xa8] sm:$0xff]
    %v267 = vld [vmem:[#allocation2 + $0xb0] sm:$0xf]
    %v268 = vld [vmem:[#allocation2 + $0xb4] sm:$0xff]
    %v269 = vld [vmem:[#allocation2 + $0xbc] sm:$0xff]
    %v270 = vld [vmem:[#allocation2 + $0xc4] sm:$0xf]
    %v271 = vld [vmem:[#allocation2 + $0xc8] sm:$0xff]
    %v272 = vld [vmem:[#allocation2 + $0xd0] sm:$0xff]
    %v273 = vld [vmem:[#allocation2 + $0xd8] sm:$0xf]
    %v274 = vld [vmem:[#allocation2 + $0xdc] sm:$0xff]
    %v275 = vld [vmem:[#allocation2 + $0xe4] sm:$0xff]
    %v276 = vld [vmem:[#allocation2 + $0xec] sm:$0xf]
    %v277 = vld [vmem:[#allocation2 + $0xf0] sm:$0xff]
    %v278 = vld [vmem:[#allocation2 + $0xf8] sm:$0xff]
    %v279 = vld [vmem:[#allocation2 + $0x100] sm:$0xf]
    %v280 = vld [vmem:[#allocation2 + $0x104] sm:$0xff]
    %v281 = vld [vmem:[#allocation2 + $0x10c] sm:$0xff]
    %v282 = vld [vmem:[#allocation2 + $0x114] sm:$0xf]
    %v283 = vld [vmem:[#allocation2 + $0x118] sm:$0xff]
    %v284 = vld [vmem:[#allocation2 + $0x120] sm:$0xff]
    %v285 = vld [vmem:[#allocation2 + $0x128] sm:$0xf]
    %v286 = vld [vmem:[#allocation2 + $0x12c] sm:$0xff]
    %v287 = vld [vmem:[#allocation2 + $0x134] sm:$0xff]
    %v288 = vld [vmem:[#allocation2 + $0x13c] sm:$0xf]
    %v289 = vld [vmem:[#allocation2 + $0x140] sm:$0xff]
    %v290 = vld [vmem:[#allocation2 + $0x148] sm:$0xff]
    %v291 = vld [vmem:[#allocation2 + $0x150] sm:$0xf]
    %v292 = vld [vmem:[#allocation2 + $0x154] sm:$0xff]
    %v293 = vld [vmem:[#allocation2 + $0x15c] sm:$0xff]
    %v294 = vld [vmem:[#allocation2 + $0x164] sm:$0xf]
    %v295 = vld [vmem:[#allocation2 + $0x168] sm:$0xff]
    %v296 = vld [vmem:[#allocation2 + $0x170] sm:$0xff]
    %v297 = vld [vmem:[#allocation2 + $0x178] sm:$0xf]
    %v298 = vld [vmem:[#allocation2 + $0x17c] sm:$0xff]
    %v299 = vld [vmem:[#allocation2 + $0x184] sm:$0xff]
    %v300 = vld [vmem:[#allocation2 + $0x18c] sm:$0xf]
    %v301 = vld [vmem:[#allocation2 + $0x190] sm:$0xff]
    %v302 = vld [vmem:[#allocation2 + $0x198] sm:$0xff]
    %v303 = vld [vmem:[#allocation2 + $0x1a0] sm:$0xf]
    %v304 = vld [vmem:[#allocation2 + $0x1a4] sm:$0xff]
    %v305 = vld [vmem:[#allocation2 + $0x1ac] sm:$0xff]
    %v306 = vld [vmem:[#allocation2 + $0x1b4] sm:$0xf]
    %v307 = vld [vmem:[#allocation2 + $0x1b8] sm:$0xff]
    %v308 = vld [vmem:[#allocation2 + $0x1c0] sm:$0xff]
    %v309 = vld [vmem:[#allocation2 + $0x1c8] sm:$0xf]
    %v310 = vld [vmem:[#allocation2 + $0x1cc] sm:$0xff]
    %v311 = vld [vmem:[#allocation2 + $0x1d4] sm:$0xff]
    %v312 = vld [vmem:[#allocation2 + $0x1dc] sm:$0xf]
    %v313 = vld [vmem:[#allocation2 + $0x1e0] sm:$0xff]
    %v314 = vld [vmem:[#allocation2 + $0x1e8] sm:$0xff]
    %v315 = vld [vmem:[#allocation2 + $0x1f0] sm:$0xf]
    %v316 = vld [vmem:[#allocation2 + $0x1f4] sm:$0xff]
    %v317 = vld [vmem:[#allocation2 + $0x1fc] sm:$0xff]
    %v318 = vld [vmem:[#allocation2 + $0x204] sm:$0xf]
    %v319 = vld [vmem:[#allocation2 + $0x208] sm:$0xff]
    %v320 = vld [vmem:[#allocation2 + $0x210] sm:$0xff]
    %v321 = vld [vmem:[#allocation2 + $0x218] sm:$0xf]
    %v322 = vld [vmem:[#allocation2 + $0x21c] sm:$0xff]
    %v323 = vld [vmem:[#allocation2 + $0x224] sm:$0xff]
    %v324 = vld [vmem:[#allocation2 + $0x22c] sm:$0xf]
    %v325 = vld [vmem:[#allocation2 + $0x230] sm:$0xff]
    %v326 = vld [vmem:[#allocation2 + $0x238] sm:$0xff]
    %v327 = vld [vmem:[#allocation2 + $0x240] sm:$0xf]
    %v328 = vld [vmem:[#allocation2 + $0x244] sm:$0xff]
    %v329 = vld [vmem:[#allocation2 + $0x24c] sm:$0xff]
    %v330 = vld [vmem:[#allocation2 + $0x254] sm:$0xf]
    %v331 = vld [vmem:[#allocation2 + $0x258] sm:$0xff]
    %v332 = vld [vmem:[#allocation2 + $0x260] sm:$0xff]
    %v333 = vld [vmem:[#allocation2 + $0x268] sm:$0xf]
    %v334 = vld [vmem:[#allocation2 + $0x26c] sm:$0xff]
    %v335 = vld [vmem:[#allocation2 + $0x274] sm:$0xff]
    %v336 = vld [vmem:[#allocation2 + $0x27c] sm:$0xf]
    %v337 = vld [vmem:[#allocation2 + $0x280] sm:$0xff]
    %v338 = vld [vmem:[#allocation2 + $0x288] sm:$0xff]
    %v339 = vld [vmem:[#allocation2 + $0x290] sm:$0xf]
    %v340 = vld [vmem:[#allocation2 + $0x294] sm:$0xff]
    %v341 = vld [vmem:[#allocation2 + $0x29c] sm:$0xff]
    %v342 = vld [vmem:[#allocation2 + $0x2a4] sm:$0xf]
    %v343 = vld [vmem:[#allocation2 + $0x2a8] sm:$0xff]
    %v344 = vld [vmem:[#allocation2 + $0x2b0] sm:$0xff]
    %v345 = vld [vmem:[#allocation2 + $0x2b8] sm:$0xf]
    %v346 = vld [vmem:[#allocation2 + $0x2bc] sm:$0xff]
    %v347 = vld [vmem:[#allocation2 + $0x2c4] sm:$0xff]
    %v348 = vld [vmem:[#allocation2 + $0x2cc] sm:$0xf]
    %v349 = vld [vmem:[#allocation2 + $0x2d0] sm:$0xff]
    %v350 = vld [vmem:[#allocation2 + $0x2d8] sm:$0xff]
    %v351 = vld [vmem:[#allocation2 + $0x2e0] sm:$0xf]
    %v352 = vld [vmem:[#allocation2 + $0x2e4] sm:$0xff]
    %v353 = vld [vmem:[#allocation2 + $0x2ec] sm:$0xff]
    %v354 = vld [vmem:[#allocation2 + $0x2f4] sm:$0xf]
    %v355 = vld [vmem:[#allocation2 + $0x2f8] sm:$0xff]
    %v356 = vld [vmem:[#allocation2 + $0x300] sm:$0xff]
    %v357 = vld [vmem:[#allocation2 + $0x308] sm:$0xf]
    %v358 = vld [vmem:[#allocation2 + $0x30c] sm:$0xff]
    %v359 = vld [vmem:[#allocation2 + $0x314] sm:$0xff]
    %v360 = vld [vmem:[#allocation2 + $0x31c] sm:$0xf]
    %v361 = vld [vmem:[#allocation2 + $0x320] sm:$0xff]
    %v362 = vld [vmem:[#allocation2 + $0x328] sm:$0xff]
    %v363 = vld [vmem:[#allocation2 + $0x330] sm:$0xf]
    %v364 = vld [vmem:[#allocation2 + $0x334] sm:$0xff]
    %v365 = vld [vmem:[#allocation2 + $0x33c] sm:$0xff]
    %v366 = vld [vmem:[#allocation2 + $0x344] sm:$0xf]
    %v367 = vld [vmem:[#allocation2 + $0x348] sm:$0xff]
    %v368 = vld [vmem:[#allocation2 + $0x350] sm:$0xff]
    %v369 = vld [vmem:[#allocation2 + $0x358] sm:$0xf]
    %v370 = vld [vmem:[#allocation2 + $0x35c] sm:$0xff]
    %v371 = vld [vmem:[#allocation2 + $0x364] sm:$0xff]
    %v372 = vld [vmem:[#allocation2 + $0x36c] sm:$0xf]
    %v373 = vld [vmem:[#allocation2 + $0x370] sm:$0xff]
    %v374 = vld [vmem:[#allocation2 + $0x378] sm:$0xff]
    %v375 = vld [vmem:[#allocation2 + $0x380] sm:$0xf]
    %v376 = vld [vmem:[#allocation2 + $0x384] sm:$0xff]
    %v377 = vld [vmem:[#allocation2 + $0x38c] sm:$0xff]
    %v378 = vld [vmem:[#allocation2 + $0x394] sm:$0xf]
    %v379 = vld [vmem:[#allocation2 + $0x398] sm:$0xff]
    %v380 = vld [vmem:[#allocation2 + $0x3a0] sm:$0xff]
    %v381 = vld [vmem:[#allocation2 + $0x3a8] sm:$0xf]
    %v382 = vld [vmem:[#allocation2 + $0x3ac] sm:$0xff]
    %v383 = vld [vmem:[#allocation2 + $0x3b4] sm:$0xff]
    %v384 = vld [vmem:[#allocation2 + $0x3bc] sm:$0xf]
    %v385 = vld [vmem:[%s4] sm:$0x1f]
    %v387 = vlaneseq
    %v388 = vshrl.u32 %v387, 7
    %v389 = vsub.s32 0, %v388
    %v390 = vrot.slane %v385, %v389
    %v391 = vlaneseq
    %v392 = vshrl.u32 %v391, 7
    %v393 = vsub.s32 1, %v392
    %v394 = vrot.slane %v385, %v393
    %v395 = vlaneseq
    %v396 = vshrl.u32 %v395, 7
    %v397 = vsub.s32 2, %v396
    %v398 = vrot.slane %v385, %v397
    %v399 = vlaneseq
    %v400 = vshrl.u32 %v399, 7
    %v401 = vsub.s32 3, %v400
    %v402 = vrot.slane %v385, %v401
    %v403 = vlaneseq
    %v404 = vshrl.u32 %v403, 7
    %v405 = vsub.s32 4, %v404
    %v406 = vrot.slane %v385, %v405
    %v556 = vunpack.c.l.b16 %v241
    %v557 = vunpack.c.h.b16 %v241
    %v558 = vunpack.c.l.b16 %v242
    %v559 = vunpack.c.h.b16 %v242
    %v560 = vunpack.c.l.b16 %v243
    %v561 = vunpack.c.l.b16 %v244
    %v562 = vunpack.c.h.b16 %v244
    %v563 = vunpack.c.l.b16 %v245
    %v564 = vunpack.c.h.b16 %v245
    %v565 = vunpack.c.l.b16 %v246
    %v566 = vunpack.c.l.b16 %v247
    %v567 = vunpack.c.h.b16 %v247
    %v568 = vunpack.c.l.b16 %v248
    %v569 = vunpack.c.h.b16 %v248
    %v570 = vunpack.c.l.b16 %v249
    %v571 = vunpack.c.l.b16 %v250
    %v572 = vunpack.c.h.b16 %v250
    %v573 = vunpack.c.l.b16 %v251
    %v574 = vunpack.c.h.b16 %v251
    %v575 = vunpack.c.l.b16 %v252
    %v576 = vunpack.c.l.b16 %v253
    %v577 = vunpack.c.h.b16 %v253
    %v578 = vunpack.c.l.b16 %v254
    %v579 = vunpack.c.h.b16 %v254
    %v580 = vunpack.c.l.b16 %v255
    %v581 = vunpack.c.l.b16 %v256
    %v582 = vunpack.c.h.b16 %v256
    %v583 = vunpack.c.l.b16 %v257
    %v584 = vunpack.c.h.b16 %v257
    %v585 = vunpack.c.l.b16 %v258
    %v586 = vunpack.c.l.b16 %v259
    %v587 = vunpack.c.h.b16 %v259
    %v588 = vunpack.c.l.b16 %v260
    %v589 = vunpack.c.h.b16 %v260
    %v590 = vunpack.c.l.b16 %v261
    %v591 = vunpack.c.l.b16 %v262
    %v592 = vunpack.c.h.b16 %v262
    %v593 = vunpack.c.l.b16 %v263
    %v594 = vunpack.c.h.b16 %v263
    %v595 = vunpack.c.l.b16 %v264
    %v596 = vunpack.c.l.b16 %v265
    %v597 = vunpack.c.h.b16 %v265
    %v598 = vunpack.c.l.b16 %v266
    %v599 = vunpack.c.h.b16 %v266
    %v600 = vunpack.c.l.b16 %v267
    %v601 = vunpack.c.l.b16 %v268
    %v602 = vunpack.c.h.b16 %v268
    %v603 = vunpack.c.l.b16 %v269
    %v604 = vunpack.c.h.b16 %v269
    %v605 = vunpack.c.l.b16 %v270
    %v606 = vunpack.c.l.b16 %v271
    %v607 = vunpack.c.h.b16 %v271
    %v608 = vunpack.c.l.b16 %v272
    %v609 = vunpack.c.h.b16 %v272
    %v610 = vunpack.c.l.b16 %v273
    %v611 = vunpack.c.l.b16 %v274
    %v612 = vunpack.c.h.b16 %v274
    %v613 = vunpack.c.l.b16 %v275
    %v614 = vunpack.c.h.b16 %v275
    %v615 = vunpack.c.l.b16 %v276
    %v616 = vunpack.c.l.b16 %v277
    %v617 = vunpack.c.h.b16 %v277
    %v618 = vunpack.c.l.b16 %v278
    %v619 = vunpack.c.h.b16 %v278
    %v620 = vunpack.c.l.b16 %v279
    %v621 = vunpack.c.l.b16 %v280
    %v622 = vunpack.c.h.b16 %v280
    %v623 = vunpack.c.l.b16 %v281
    %v624 = vunpack.c.h.b16 %v281
    %v625 = vunpack.c.l.b16 %v282
    %v626 = vunpack.c.l.b16 %v283
    %v627 = vunpack.c.h.b16 %v283
    %v628 = vunpack.c.l.b16 %v284
    %v629 = vunpack.c.h.b16 %v284
    %v630 = vunpack.c.l.b16 %v285
    %v631 = vunpack.c.l.b16 %v286
    %v632 = vunpack.c.h.b16 %v286
    %v633 = vunpack.c.l.b16 %v287
    %v634 = vunpack.c.h.b16 %v287
    %v635 = vunpack.c.l.b16 %v288
    %v636 = vunpack.c.l.b16 %v289
    %v637 = vunpack.c.h.b16 %v289
    %v638 = vunpack.c.l.b16 %v290
    %v639 = vunpack.c.h.b16 %v290
    %v640 = vunpack.c.l.b16 %v291
    %v641 = vunpack.c.l.b16 %v292
    %v642 = vunpack.c.h.b16 %v292
    %v643 = vunpack.c.l.b16 %v293
    %v644 = vunpack.c.h.b16 %v293
    %v645 = vunpack.c.l.b16 %v294
    %v646 = vunpack.c.l.b16 %v295
    %v647 = vunpack.c.h.b16 %v295
    %v648 = vunpack.c.l.b16 %v296
    %v649 = vunpack.c.h.b16 %v296
    %v650 = vunpack.c.l.b16 %v297
    %v651 = vunpack.c.l.b16 %v298
    %v652 = vunpack.c.h.b16 %v298
    %v653 = vunpack.c.l.b16 %v299
    %v654 = vunpack.c.h.b16 %v299
    %v655 = vunpack.c.l.b16 %v300
    %v656 = vunpack.c.l.b16 %v301
    %v657 = vunpack.c.h.b16 %v301
    %v658 = vunpack.c.l.b16 %v302
    %v659 = vunpack.c.h.b16 %v302
    %v660 = vunpack.c.l.b16 %v303
    %v661 = vunpack.c.l.b16 %v304
    %v662 = vunpack.c.h.b16 %v304
    %v663 = vunpack.c.l.b16 %v305
    %v664 = vunpack.c.h.b16 %v305
    %v665 = vunpack.c.l.b16 %v306
    %v666 = vunpack.c.l.b16 %v307
    %v667 = vunpack.c.h.b16 %v307
    %v668 = vunpack.c.l.b16 %v308
    %v669 = vunpack.c.h.b16 %v308
    %v670 = vunpack.c.l.b16 %v309
    %v671 = vunpack.c.l.b16 %v310
    %v672 = vunpack.c.h.b16 %v310
    %v673 = vunpack.c.l.b16 %v311
    %v674 = vunpack.c.h.b16 %v311
    %v675 = vunpack.c.l.b16 %v312
    %v676 = vunpack.c.l.b16 %v313
    %v677 = vunpack.c.h.b16 %v313
    %v678 = vunpack.c.l.b16 %v314
    %v679 = vunpack.c.h.b16 %v314
    %v680 = vunpack.c.l.b16 %v315
    %v681 = vunpack.c.l.b16 %v316
    %v682 = vunpack.c.h.b16 %v316
    %v683 = vunpack.c.l.b16 %v317
    %v684 = vunpack.c.h.b16 %v317
    %v685 = vunpack.c.l.b16 %v318
    %v686 = vunpack.c.l.b16 %v319
    %v687 = vunpack.c.h.b16 %v319
    %v688 = vunpack.c.l.b16 %v320
    %v689 = vunpack.c.h.b16 %v320
    %v690 = vunpack.c.l.b16 %v321
    %v691 = vunpack.c.l.b16 %v322
    %v692 = vunpack.c.h.b16 %v322
    %v693 = vunpack.c.l.b16 %v323
    %v694 = vunpack.c.h.b16 %v323
    %v695 = vunpack.c.l.b16 %v324
    %v696 = vunpack.c.l.b16 %v325
    %v697 = vunpack.c.h.b16 %v325
    %v698 = vunpack.c.l.b16 %v326
    %v699 = vunpack.c.h.b16 %v326
    %v700 = vunpack.c.l.b16 %v327
    %v701 = vunpack.c.l.b16 %v328
    %v702 = vunpack.c.h.b16 %v328
    %v703 = vunpack.c.l.b16 %v329
    %v704 = vunpack.c.h.b16 %v329
    %v705 = vunpack.c.l.b16 %v330
    %v706 = vunpack.c.l.b16 %v331
    %v707 = vunpack.c.h.b16 %v331
    %v708 = vunpack.c.l.b16 %v332
    %v709 = vunpack.c.h.b16 %v332
    %v710 = vunpack.c.l.b16 %v333
    %v711 = vunpack.c.l.b16 %v334
    %v712 = vunpack.c.h.b16 %v334
    %v713 = vunpack.c.l.b16 %v335
    %v714 = vunpack.c.h.b16 %v335
    %v715 = vunpack.c.l.b16 %v336
    %v716 = vunpack.c.l.b16 %v337
    %v717 = vunpack.c.h.b16 %v337
    %v718 = vunpack.c.l.b16 %v338
    %v719 = vunpack.c.h.b16 %v338
    %v720 = vunpack.c.l.b16 %v339
    %v721 = vunpack.c.l.b16 %v340
    %v722 = vunpack.c.h.b16 %v340
    %v723 = vunpack.c.l.b16 %v341
    %v724 = vunpack.c.h.b16 %v341
    %v725 = vunpack.c.l.b16 %v342
    %v726 = vunpack.c.l.b16 %v343
    %v727 = vunpack.c.h.b16 %v343
    %v728 = vunpack.c.l.b16 %v344
    %v729 = vunpack.c.h.b16 %v344
    %v730 = vunpack.c.l.b16 %v345
    %v731 = vunpack.c.l.b16 %v346
    %v732 = vunpack.c.h.b16 %v346
    %v733 = vunpack.c.l.b16 %v347
    %v734 = vunpack.c.h.b16 %v347
    %v735 = vunpack.c.l.b16 %v348
    %v736 = vunpack.c.l.b16 %v349
    %v737 = vunpack.c.h.b16 %v349
    %v738 = vunpack.c.l.b16 %v350
    %v739 = vunpack.c.h.b16 %v350
    %v740 = vunpack.c.l.b16 %v351
    %v741 = vunpack.c.l.b16 %v352
    %v742 = vunpack.c.h.b16 %v352
    %v743 = vunpack.c.l.b16 %v353
    %v744 = vunpack.c.h.b16 %v353
    %v745 = vunpack.c.l.b16 %v354
    %v746 = vunpack.c.l.b16 %v355
    %v747 = vunpack.c.h.b16 %v355
    %v748 = vunpack.c.l.b16 %v356
    %v749 = vunpack.c.h.b16 %v356
    %v750 = vunpack.c.l.b16 %v357
    %v751 = vunpack.c.l.b16 %v358
    %v752 = vunpack.c.h.b16 %v358
    %v753 = vunpack.c.l.b16 %v359
    %v754 = vunpack.c.h.b16 %v359
    %v755 = vunpack.c.l.b16 %v360
    %v756 = vunpack.c.l.b16 %v361
    %v757 = vunpack.c.h.b16 %v361
    %v758 = vunpack.c.l.b16 %v362
    %v759 = vunpack.c.h.b16 %v362
    %v760 = vunpack.c.l.b16 %v363
    %v761 = vunpack.c.l.b16 %v364
    %v762 = vunpack.c.h.b16 %v364
    %v763 = vunpack.c.l.b16 %v365
    %v764 = vunpack.c.h.b16 %v365
    %v765 = vunpack.c.l.b16 %v366
    %v766 = vunpack.c.l.b16 %v367
    %v767 = vunpack.c.h.b16 %v367
    %v768 = vunpack.c.l.b16 %v368
    %v769 = vunpack.c.h.b16 %v368
    %v770 = vunpack.c.l.b16 %v369
    %v771 = vunpack.c.l.b16 %v370
    %v772 = vunpack.c.h.b16 %v370
    %v773 = vunpack.c.l.b16 %v371
    %v774 = vunpack.c.h.b16 %v371
    %v775 = vunpack.c.l.b16 %v372
    %v776 = vunpack.c.l.b16 %v373
    %v777 = vunpack.c.h.b16 %v373
    %v778 = vunpack.c.l.b16 %v374
    %v779 = vunpack.c.h.b16 %v374
    %v780 = vunpack.c.l.b16 %v375
    %v781 = vunpack.c.l.b16 %v376
    %v782 = vunpack.c.h.b16 %v376
    %v783 = vunpack.c.l.b16 %v377
    %v784 = vunpack.c.h.b16 %v377
    %v785 = vunpack.c.l.b16 %v378
    %v786 = vunpack.c.l.b16 %v379
    %v787 = vunpack.c.h.b16 %v379
    %v788 = vunpack.c.l.b16 %v380
    %v789 = vunpack.c.h.b16 %v380
    %v790 = vunpack.c.l.b16 %v381
    %v791 = vunpack.c.l.b16 %v382
    %v792 = vunpack.c.h.b16 %v382
    %v793 = vunpack.c.l.b16 %v383
    %v794 = vunpack.c.h.b16 %v383
    %v795 = vunpack.c.l.b16 %v384
    %v796 = vpack.c.b16 %v561, %v556
    %v797 = vpack.c.b16 %v562, %v557
    %v798 = vpack.c.b16 %v563, %v558
    %v799 = vpack.c.b16 %v564, %v559
    %v800 = vpack.c.b16 %v565, %v560
    %v801 = vpack.c.b16 %v571, %v566
    %v802 = vpack.c.b16 %v572, %v567
    %v803 = vpack.c.b16 %v573, %v568
    %v804 = vpack.c.b16 %v574, %v569
    %v805 = vpack.c.b16 %v575, %v570
    %v806 = vpack.c.b16 %v581, %v576
    %v807 = vpack.c.b16 %v582, %v577
    %v808 = vpack.c.b16 %v583, %v578
    %v809 = vpack.c.b16 %v584, %v579
    %v810 = vpack.c.b16 %v585, %v580
    %v811 = vpack.c.b16 %v591, %v586
    %v812 = vpack.c.b16 %v592, %v587
    %v813 = vpack.c.b16 %v593, %v588
    %v814 = vpack.c.b16 %v594, %v589
    %v815 = vpack.c.b16 %v595, %v590
    %v816 = vpack.c.b16 %v601, %v596
    %v817 = vpack.c.b16 %v602, %v597
    %v818 = vpack.c.b16 %v603, %v598
    %v819 = vpack.c.b16 %v604, %v599
    %v820 = vpack.c.b16 %v605, %v600
    %v821 = vpack.c.b16 %v611, %v606
    %v822 = vpack.c.b16 %v612, %v607
    %v823 = vpack.c.b16 %v613, %v608
    %v824 = vpack.c.b16 %v614, %v609
    %v825 = vpack.c.b16 %v615, %v610
    %v826 = vpack.c.b16 %v621, %v616
    %v827 = vpack.c.b16 %v622, %v617
    %v828 = vpack.c.b16 %v623, %v618
    %v829 = vpack.c.b16 %v624, %v619
    %v830 = vpack.c.b16 %v625, %v620
    %v831 = vpack.c.b16 %v631, %v626
    %v832 = vpack.c.b16 %v632, %v627
    %v833 = vpack.c.b16 %v633, %v628
    %v834 = vpack.c.b16 %v634, %v629
    %v835 = vpack.c.b16 %v635, %v630
    %v836 = vpack.c.b16 %v641, %v636
    %v837 = vpack.c.b16 %v642, %v637
    %v838 = vpack.c.b16 %v643, %v638
    %v839 = vpack.c.b16 %v644, %v639
    %v840 = vpack.c.b16 %v645, %v640
    %v841 = vpack.c.b16 %v651, %v646
    %v842 = vpack.c.b16 %v652, %v647
    %v843 = vpack.c.b16 %v653, %v648
    %v844 = vpack.c.b16 %v654, %v649
    %v845 = vpack.c.b16 %v655, %v650
    %v846 = vpack.c.b16 %v661, %v656
    %v847 = vpack.c.b16 %v662, %v657
    %v848 = vpack.c.b16 %v663, %v658
    %v849 = vpack.c.b16 %v664, %v659
    %v850 = vpack.c.b16 %v665, %v660
    %v851 = vpack.c.b16 %v671, %v666
    %v852 = vpack.c.b16 %v672, %v667
    %v853 = vpack.c.b16 %v673, %v668
    %v854 = vpack.c.b16 %v674, %v669
    %v855 = vpack.c.b16 %v675, %v670
    %v856 = vpack.c.b16 %v681, %v676
    %v857 = vpack.c.b16 %v682, %v677
    %v858 = vpack.c.b16 %v683, %v678
    %v859 = vpack.c.b16 %v684, %v679
    %v860 = vpack.c.b16 %v685, %v680
    %v861 = vpack.c.b16 %v691, %v686
    %v862 = vpack.c.b16 %v692, %v687
    %v863 = vpack.c.b16 %v693, %v688
    %v864 = vpack.c.b16 %v694, %v689
    %v865 = vpack.c.b16 %v695, %v690
    %v866 = vpack.c.b16 %v701, %v696
    %v867 = vpack.c.b16 %v702, %v697
    %v868 = vpack.c.b16 %v703, %v698
    %v869 = vpack.c.b16 %v704, %v699
    %v870 = vpack.c.b16 %v705, %v700
    %v871 = vpack.c.b16 %v711, %v706
    %v872 = vpack.c.b16 %v712, %v707
    %v873 = vpack.c.b16 %v713, %v708
    %v874 = vpack.c.b16 %v714, %v709
    %v875 = vpack.c.b16 %v715, %v710
    %v876 = vpack.c.b16 %v721, %v716
    %v877 = vpack.c.b16 %v722, %v717
    %v878 = vpack.c.b16 %v723, %v718
    %v879 = vpack.c.b16 %v724, %v719
    %v880 = vpack.c.b16 %v725, %v720
    %v881 = vpack.c.b16 %v731, %v726
    %v882 = vpack.c.b16 %v732, %v727
    %v883 = vpack.c.b16 %v733, %v728
    %v884 = vpack.c.b16 %v734, %v729
    %v885 = vpack.c.b16 %v735, %v730
    %v886 = vpack.c.b16 %v741, %v736
    %v887 = vpack.c.b16 %v742, %v737
    %v888 = vpack.c.b16 %v743, %v738
    %v889 = vpack.c.b16 %v744, %v739
    %v890 = vpack.c.b16 %v745, %v740
    %v891 = vpack.c.b16 %v751, %v746
    %v892 = vpack.c.b16 %v752, %v747
    %v893 = vpack.c.b16 %v753, %v748
    %v894 = vpack.c.b16 %v754, %v749
    %v895 = vpack.c.b16 %v755, %v750
    %v896 = vpack.c.b16 %v761, %v756
    %v897 = vpack.c.b16 %v762, %v757
    %v898 = vpack.c.b16 %v763, %v758
    %v899 = vpack.c.b16 %v764, %v759
    %v900 = vpack.c.b16 %v765, %v760
    %v901 = vpack.c.b16 %v771, %v766
    %v902 = vpack.c.b16 %v772, %v767
    %v903 = vpack.c.b16 %v773, %v768
    %v904 = vpack.c.b16 %v774, %v769
    %v905 = vpack.c.b16 %v775, %v770
    %v906 = vpack.c.b16 %v781, %v776
    %v907 = vpack.c.b16 %v782, %v777
    %v908 = vpack.c.b16 %v783, %v778
    %v909 = vpack.c.b16 %v784, %v779
    %v910 = vpack.c.b16 %v785, %v780
    %v911 = vpack.c.b16 %v791, %v786
    %v912 = vpack.c.b16 %v792, %v787
    %v913 = vpack.c.b16 %v793, %v788
    %v914 = vpack.c.b16 %v794, %v789
    %v915 = vpack.c.b16 %v795, %v790
    %1036 = vmatprep.subr.bf16.mxu0 %v832
    %1037 = vmatpush1.bf16.msra.mxu0 %v831
    %1038 = vmatprep.subr.bf16.mxu0 %v827
    %1039 = vmatpush1.bf16.msra.mxu0 %v826
    %1040 = vmatprep.subr.bf16.mxu0 %v822
    %1041 = vmatpush1.bf16.msra.mxu0 %v821
    %1042 = vmatprep.subr.bf16.mxu0 %v817
    %1043 = vmatpush1.bf16.msra.mxu0 %v816
    %1044 = vmatprep.subr.bf16.mxu0 %v812
    %1045 = vmatpush1.bf16.msra.mxu0 %v811
    %1046 = vmatprep.subr.bf16.mxu0 %v807
    %1047 = vmatpush1.bf16.msra.mxu0 %v806
    %1048 = vmatprep.subr.bf16.mxu0 %v802
    %1049 = vmatpush1.bf16.msra.mxu0 %v801
    %1050 = vmatprep.subr.bf16.mxu0 %v797
    %1051 = vmatpush1.bf16.msra.mxu0 %v796
    %1052 = vmatprep.subr.bf16.mxu0 %v872
    %1053 = vmatpush2.bf16.msra.mxu0 %v871
    %1054 = vmatprep.subr.bf16.mxu0 %v867
    %1055 = vmatpush2.bf16.msra.mxu0 %v866
    %1056 = vmatprep.subr.bf16.mxu0 %v862
    %1057 = vmatpush2.bf16.msra.mxu0 %v861
    %1058 = vmatprep.subr.bf16.mxu0 %v857
    %1059 = vmatpush2.bf16.msra.mxu0 %v856
    %1060 = vmatprep.subr.bf16.mxu0 %v852
    %1061 = vmatpush2.bf16.msra.mxu0 %v851
    %1062 = vmatprep.subr.bf16.mxu0 %v847
    %1063 = vmatpush2.bf16.msra.mxu0 %v846
    %1064 = vmatprep.subr.bf16.mxu0 %v842
    %1065 = vmatpush2.bf16.msra.mxu0 %v841
    %1066 = vmatprep.subr.bf16.mxu0 %v837
    %1067 = vmatpush2.bf16.msra.mxu0 %v836
    %1068 = vmatprep.mubr.bf16.mxu0 %v239
    %1069 = vmatmul.mubr.bf16.gmra.mxu0 %v238
    %v1070 = vpop.f32.mrf.mxu0
    %v1071 = vadd.f32 %v390, %v1070
    %v1072 = vpop.f32.mrf.mxu0
    %v1073 = vadd.f32 %v394, %v1072
    %v1074 = vpop.f32.mrf.mxu0
    %v1075 = vadd.f32 %v390, %v1074
    %v1076 = vpop.f32.mrf.mxu0
    %v1077 = vadd.f32 %v394, %v1076
    %1078 = vdwg.mxu0
    %1079 = vmatprep.subr.bf16.mxu0 %v912
    %1080 = vmatpush1.bf16.msra.mxu0 %v911
    %1081 = vmatprep.subr.bf16.mxu0 %v907
    %1082 = vmatpush1.bf16.msra.mxu0 %v906
    %1083 = vmatprep.subr.bf16.mxu0 %v902
    %1084 = vmatpush1.bf16.msra.mxu0 %v901
    %1085 = vmatprep.subr.bf16.mxu0 %v897
    %1086 = vmatpush1.bf16.msra.mxu0 %v896
    %1087 = vmatprep.subr.bf16.mxu0 %v892
    %1088 = vmatpush1.bf16.msra.mxu0 %v891
    %1089 = vmatprep.subr.bf16.mxu0 %v887
    %1090 = vmatpush1.bf16.msra.mxu0 %v886
    %1091 = vmatprep.subr.bf16.mxu0 %v882
    %1092 = vmatpush1.bf16.msra.mxu0 %v881
    %1093 = vmatprep.subr.bf16.mxu0 %v877
    %1094 = vmatpush1.bf16.msra.mxu0 %v876
    %1095 = vmatprep.subr.bf16.mxu0 0
    %1096 = vmatpush2.bf16.msra.mxu0 0
    %1097 = vmatprep.subr.bf16.mxu0 0
    %1098 = vmatpush2.bf16.msra.mxu0 0
    %1099 = vmatprep.subr.bf16.mxu0 0
    %1100 = vmatpush2.bf16.msra.mxu0 0
    %1101 = vmatprep.subr.bf16.mxu0 0
    %1102 = vmatpush2.bf16.msra.mxu0 0
    %1103 = vmatprep.subr.bf16.mxu0 0
    %1104 = vmatpush2.bf16.msra.mxu0 0
    %1105 = vmatprep.subr.bf16.mxu0 0
    %1106 = vmatpush2.bf16.msra.mxu0 0
    %1107 = vmatprep.subr.bf16.mxu0 0
    %1108 = vmatpush2.bf16.msra.mxu0 0
    %1109 = vmatprep.subr.bf16.mxu0 0
    %1110 = vmatpush2.bf16.msra.mxu0 0
    %1111 = vmatprep.mubr.bf16.mxu0 0
    %1112 = vmatmul.mubr.bf16.gmra.mxu0 %v240
    %v1113 = vpop.f32.mrf.mxu0
    %v1114 = vadd.f32 %v1071, %v1113
    %v1115 = vpop.f32.mrf.mxu0
    %v1116 = vadd.f32 %v1073, %v1115
    %v1117 = vpop.f32.mrf.mxu0
    %v1118 = vadd.f32 %v1075, %v1117
    %v1119 = vpop.f32.mrf.mxu0
    %v1120 = vadd.f32 %v1077, %v1119
    %1121 = vdwg.mxu0
    %1122 = vmatprep.subr.bf16.mxu0 %v834
    %1123 = vmatpush1.bf16.msra.mxu0 %v833
    %1124 = vmatprep.subr.bf16.mxu0 %v829
    %1125 = vmatpush1.bf16.msra.mxu0 %v828
    %1126 = vmatprep.subr.bf16.mxu0 %v824
    %1127 = vmatpush1.bf16.msra.mxu0 %v823
    %1128 = vmatprep.subr.bf16.mxu0 %v819
    %1129 = vmatpush1.bf16.msra.mxu0 %v818
    %1130 = vmatprep.subr.bf16.mxu0 %v814
    %1131 = vmatpush1.bf16.msra.mxu0 %v813
    %1132 = vmatprep.subr.bf16.mxu0 %v809
    %1133 = vmatpush1.bf16.msra.mxu0 %v808
    %1134 = vmatprep.subr.bf16.mxu0 %v804
    %1135 = vmatpush1.bf16.msra.mxu0 %v803
    %1136 = vmatprep.subr.bf16.mxu0 %v799
    %1137 = vmatpush1.bf16.msra.mxu0 %v798
    %1138 = vmatprep.subr.bf16.mxu0 %v874
    %1139 = vmatpush2.bf16.msra.mxu0 %v873
    %1140 = vmatprep.subr.bf16.mxu0 %v869
    %1141 = vmatpush2.bf16.msra.mxu0 %v868
    %1142 = vmatprep.subr.bf16.mxu0 %v864
    %1143 = vmatpush2.bf16.msra.mxu0 %v863
    %1144 = vmatprep.subr.bf16.mxu0 %v859
    %1145 = vmatpush2.bf16.msra.mxu0 %v858
    %1146 = vmatprep.subr.bf16.mxu0 %v854
    %1147 = vmatpush2.bf16.msra.mxu0 %v853
    %1148 = vmatprep.subr.bf16.mxu0 %v849
    %1149 = vmatpush2.bf16.msra.mxu0 %v848
    %1150 = vmatprep.subr.bf16.mxu0 %v844
    %1151 = vmatpush2.bf16.msra.mxu0 %v843
    %1152 = vmatprep.subr.bf16.mxu0 %v839
    %1153 = vmatpush2.bf16.msra.mxu0 %v838
    %1154 = vmatprep.mubr.bf16.mxu0 %v239
    %1155 = vmatmul.mubr.bf16.gmra.mxu0 %v238
    %v1156 = vpop.f32.mrf.mxu0
    %v1157 = vadd.f32 %v398, %v1156
    %v1158 = vpop.f32.mrf.mxu0
    %v1159 = vadd.f32 %v402, %v1158
    %v1160 = vpop.f32.mrf.mxu0
    %v1161 = vadd.f32 %v398, %v1160
    %v1162 = vpop.f32.mrf.mxu0
    %v1163 = vadd.f32 %v402, %v1162
    %1164 = vdwg.mxu0
    %1165 = vmatprep.subr.bf16.mxu0 %v914
    %1166 = vmatpush1.bf16.msra.mxu0 %v913
    %1167 = vmatprep.subr.bf16.mxu0 %v909
    %1168 = vmatpush1.bf16.msra.mxu0 %v908
    %1169 = vmatprep.subr.bf16.mxu0 %v904
    %1170 = vmatpush1.bf16.msra.mxu0 %v903
    %1171 = vmatprep.subr.bf16.mxu0 %v899
    %1172 = vmatpush1.bf16.msra.mxu0 %v898
    %1173 = vmatprep.subr.bf16.mxu0 %v894
    %1174 = vmatpush1.bf16.msra.mxu0 %v893
    %1175 = vmatprep.subr.bf16.mxu0 %v889
    %1176 = vmatpush1.bf16.msra.mxu0 %v888
    %1177 = vmatprep.subr.bf16.mxu0 %v884
    %1178 = vmatpush1.bf16.msra.mxu0 %v883
    %1179 = vmatprep.subr.bf16.mxu0 %v879
    %1180 = vmatpush1.bf16.msra.mxu0 %v878
    %1181 = vmatprep.subr.bf16.mxu0 0
    %1182 = vmatpush2.bf16.msra.mxu0 0
    %1183 = vmatprep.subr.bf16.mxu0 0
    %1184 = vmatpush2.bf16.msra.mxu0 0
    %1185 = vmatprep.subr.bf16.mxu0 0
    %1186 = vmatpush2.bf16.msra.mxu0 0
    %1187 = vmatprep.subr.bf16.mxu0 0
    %1188 = vmatpush2.bf16.msra.mxu0 0
    %1189 = vmatprep.subr.bf16.mxu0 0
    %1190 = vmatpush2.bf16.msra.mxu0 0
    %1191 = vmatprep.subr.bf16.mxu0 0
    %1192 = vmatpush2.bf16.msra.mxu0 0
    %1193 = vmatprep.subr.bf16.mxu0 0
    %1194 = vmatpush2.bf16.msra.mxu0 0
    %1195 = vmatprep.subr.bf16.mxu0 0
    %1196 = vmatpush2.bf16.msra.mxu0 0
    %1197 = vmatprep.mubr.bf16.mxu0 0
    %1198 = vmatmul.mubr.bf16.gmra.mxu0 %v240
    %v1199 = vpop.f32.mrf.mxu0
    %v1200 = vadd.f32 %v1157, %v1199
    %v1201 = vpop.f32.mrf.mxu0
    %v1202 = vadd.f32 %v1159, %v1201
    %v1203 = vpop.f32.mrf.mxu0
    %v1204 = vadd.f32 %v1161, %v1203
    %v1205 = vpop.f32.mrf.mxu0
    %v1206 = vadd.f32 %v1163, %v1205
    %1207 = vdwg.mxu0
    %1208 = vmatprep.subr.bf16.mxu0 0
    %1209 = vmatpush1.bf16.msra.mxu0 %v835
    %1210 = vmatprep.subr.bf16.mxu0 0
    %1211 = vmatpush1.bf16.msra.mxu0 %v830
    %1212 = vmatprep.subr.bf16.mxu0 0
    %1213 = vmatpush1.bf16.msra.mxu0 %v825
    %1214 = vmatprep.subr.bf16.mxu0 0
    %1215 = vmatpush1.bf16.msra.mxu0 %v820
    %1216 = vmatprep.subr.bf16.mxu0 0
    %1217 = vmatpush1.bf16.msra.mxu0 %v815
    %1218 = vmatprep.subr.bf16.mxu0 0
    %1219 = vmatpush1.bf16.msra.mxu0 %v810
    %1220 = vmatprep.subr.bf16.mxu0 0
    %1221 = vmatpush1.bf16.msra.mxu0 %v805
    %1222 = vmatprep.subr.bf16.mxu0 0
    %1223 = vmatpush1.bf16.msra.mxu0 %v800
    %1224 = vmatprep.subr.bf16.mxu0 0
    %1225 = vmatpush2.bf16.msra.mxu0 %v875
    %1226 = vmatprep.subr.bf16.mxu0 0
    %1227 = vmatpush2.bf16.msra.mxu0 %v870
    %1228 = vmatprep.subr.bf16.mxu0 0
    %1229 = vmatpush2.bf16.msra.mxu0 %v865
    %1230 = vmatprep.subr.bf16.mxu0 0
    %1231 = vmatpush2.bf16.msra.mxu0 %v860
    %1232 = vmatprep.subr.bf16.mxu0 0
    %1233 = vmatpush2.bf16.msra.mxu0 %v855
    %1234 = vmatprep.subr.bf16.mxu0 0
    %1235 = vmatpush2.bf16.msra.mxu0 %v850
    %1236 = vmatprep.subr.bf16.mxu0 0
    %1237 = vmatpush2.bf16.msra.mxu0 %v845
    %1238 = vmatprep.subr.bf16.mxu0 0
    %1239 = vmatpush2.bf16.msra.mxu0 %v840
    %1240 = vmatprep.mubr.bf16.mxu0 %v239
    %1241 = vmatmul.mubr.bf16.gmra.mxu0 %v238
    %v1242 = vpop.f32.mrf.mxu0
    %v1243 = vadd.f32 %v406, %v1242
    %v1244 = vpop.f32.mrf.mxu0
    %v1245 = vpop.f32.mrf.mxu0
    %v1246 = vadd.f32 %v406, %v1245
    %v1247 = vpop.f32.mrf.mxu0
    %1248 = vdwg.mxu0
    %1249 = vmatprep.subr.bf16.mxu0 0
    %1250 = vmatpush1.bf16.msra.mxu0 %v915
    %1251 = vmatprep.subr.bf16.mxu0 0
    %1252 = vmatpush1.bf16.msra.mxu0 %v910
    %1253 = vmatprep.subr.bf16.mxu0 0
    %1254 = vmatpush1.bf16.msra.mxu0 %v905
    %1255 = vmatprep.subr.bf16.mxu0 0
    %1256 = vmatpush1.bf16.msra.mxu0 %v900
    %1257 = vmatprep.subr.bf16.mxu0 0
    %1258 = vmatpush1.bf16.msra.mxu0 %v895
    %1259 = vmatprep.subr.bf16.mxu0 0
    %1260 = vmatpush1.bf16.msra.mxu0 %v890
    %1261 = vmatprep.subr.bf16.mxu0 0
    %1262 = vmatpush1.bf16.msra.mxu0 %v885
    %1263 = vmatprep.subr.bf16.mxu0 0
    %1264 = vmatpush1.bf16.msra.mxu0 %v880
    %1265 = vmatprep.subr.bf16.mxu0 0
    %1266 = vmatpush2.bf16.msra.mxu0 0
    %1267 = vmatprep.subr.bf16.mxu0 0
    %1268 = vmatpush2.bf16.msra.mxu0 0
    %1269 = vmatprep.subr.bf16.mxu0 0
    %1270 = vmatpush2.bf16.msra.mxu0 0
    %1271 = vmatprep.subr.bf16.mxu0 0
    %1272 = vmatpush2.bf16.msra.mxu0 0
    %1273 = vmatprep.subr.bf16.mxu0 0
    %1274 = vmatpush2.bf16.msra.mxu0 0
    %1275 = vmatprep.subr.bf16.mxu0 0
    %1276 = vmatpush2.bf16.msra.mxu0 0
    %1277 = vmatprep.subr.bf16.mxu0 0
    %1278 = vmatpush2.bf16.msra.mxu0 0
    %1279 = vmatprep.subr.bf16.mxu0 0
    %1280 = vmatpush2.bf16.msra.mxu0 0
    %1281 = vmatprep.mubr.bf16.mxu0 0
    %1282 = vmatmul.mubr.bf16.gmra.mxu0 %v240
    %v1283 = vpop.f32.mrf.mxu0
    %v1284 = vadd.f32 %v1243, %v1283
    %v1285 = vpop.f32.mrf.mxu0
    %v1286 = vpop.f32.mrf.mxu0
    %v1287 = vadd.f32 %v1246, %v1286
    %v1288 = vpop.f32.mrf.mxu0
    %1289 = vdwg.mxu0
    %v1290 = vmax.f32 %v1114, 0.0
    %v1291 = vmax.f32 %v1116, 0.0
    %v1292 = vmax.f32 %v1200, 0.0
    %v1293 = vmax.f32 %v1202, 0.0
    %v1294 = vmax.f32 %v1284, 0.0
    %v1295 = vmax.f32 %v1118, 0.0
    %v1296 = vmax.f32 %v1120, 0.0
    %v1297 = vmax.f32 %v1204, 0.0
    %v1298 = vmax.f32 %v1206, 0.0
    %v1299 = vmax.f32 %v1287, 0.0
    %v1300 = vpack.c.bf16 %v1295, %v1290
    %v1301 = vpack.c.bf16 %v1296, %v1291
    %v1302 = vpack.c.bf16 %v1297, %v1292
    %v1303 = vpack.c.bf16 %v1298, %v1293
    %v1304 = vpack.c.bf16 %v1299, %v1294
    %v1305 = vld [vmem:[#allocation4] sm:$0xf]
    %v1306 = vld [vmem:[#allocation4 + $0x4] sm:$0xf]
    %v1307 = vld [vmem:[#allocation4 + $0x8] sm:$0xf]
    %v1308 = vld [vmem:[#allocation4 + $0xc] sm:$0xf]
    %v1309 = vld [vmem:[#allocation4 + $0x10] sm:$0xf]
    %v1310 = vld [vmem:[#allocation4 + $0x14] sm:$0xf]
    %v1311 = vld [vmem:[#allocation4 + $0x18] sm:$0xf]
    %v1312 = vld [vmem:[#allocation4 + $0x1c] sm:$0xf]
    %v1313 = vld [vmem:[#allocation4 + $0x20] sm:$0xf]
    %v1314 = vld [vmem:[#allocation4 + $0x24] sm:$0xf]
    %v1315 = vld [vmem:[#allocation4 + $0x28] sm:$0xf]
    %v1316 = vld [vmem:[#allocation4 + $0x2c] sm:$0xf]
    %v1317 = vld [vmem:[#allocation4 + $0x30] sm:$0xf]
    %v1318 = vld [vmem:[#allocation4 + $0x34] sm:$0xf]
    %v1319 = vld [vmem:[#allocation4 + $0x38] sm:$0xf]
    %v1320 = vld [vmem:[#allocation4 + $0x3c] sm:$0xf]
    %v1321 = vld [vmem:[#allocation4 + $0x40] sm:$0xf]
    %v1322 = vld [vmem:[#allocation4 + $0x44] sm:$0xf]
    %v1323 = vld [vmem:[#allocation4 + $0x48] sm:$0xf]
    %v1324 = vld [vmem:[#allocation4 + $0x4c] sm:$0xf]
    %v1325 = vld [vmem:[#allocation4 + $0x50] sm:$0xf]
    %v1326 = vld [vmem:[#allocation4 + $0x54] sm:$0xf]
    %v1327 = vld [vmem:[#allocation4 + $0x58] sm:$0xf]
    %v1328 = vld [vmem:[#allocation4 + $0x5c] sm:$0xf]
    %v1329 = vld [vmem:[#allocation4 + $0x60] sm:$0xf]
    %v1330 = vld [vmem:[#allocation4 + $0x64] sm:$0xf]
    %v1331 = vld [vmem:[#allocation4 + $0x68] sm:$0xf]
    %v1332 = vld [vmem:[#allocation4 + $0x6c] sm:$0xf]
    %v1333 = vld [vmem:[#allocation4 + $0x70] sm:$0xf]
    %v1334 = vld [vmem:[#allocation4 + $0x74] sm:$0xf]
    %v1335 = vld [vmem:[#allocation4 + $0x78] sm:$0xf]
    %v1336 = vld [vmem:[#allocation4 + $0x7c] sm:$0xf]
    %v1337 = vld [vmem:[#allocation4 + $0x80] sm:$0xf]
    %v1338 = vld [vmem:[#allocation4 + $0x84] sm:$0xf]
    %v1339 = vld [vmem:[#allocation4 + $0x88] sm:$0xf]
    %v1340 = vld [vmem:[#allocation4 + $0x8c] sm:$0xf]
    %v1341 = vld [vmem:[#allocation4 + $0x90] sm:$0xf]
    %v1342 = vld [vmem:[#allocation4 + $0x94] sm:$0xf]
    %v1343 = vld [vmem:[#allocation4 + $0x98] sm:$0xf]
    %v1344 = vld [vmem:[#allocation4 + $0x9c] sm:$0xf]
    %v1345 = vld [vmem:[#allocation4 + $0xa0] sm:$0xf]
    %v1346 = vld [vmem:[#allocation4 + $0xa4] sm:$0xf]
    %v1347 = vld [vmem:[#allocation4 + $0xa8] sm:$0xf]
    %v1348 = vld [vmem:[#allocation4 + $0xac] sm:$0xf]
    %v1349 = vld [vmem:[#allocation4 + $0xb0] sm:$0xf]
    %v1350 = vld [vmem:[#allocation4 + $0xb4] sm:$0xf]
    %v1351 = vld [vmem:[#allocation4 + $0xb8] sm:$0xf]
    %v1352 = vld [vmem:[#allocation4 + $0xbc] sm:$0xf]
    %v1353 = vld [vmem:[#allocation4 + $0xc0] sm:$0xf]
    %v1354 = vld [vmem:[#allocation4 + $0xc4] sm:$0xf]
    %v1355 = vld [vmem:[#allocation4 + $0xc8] sm:$0xf]
    %v1356 = vld [vmem:[#allocation4 + $0xcc] sm:$0xf]
    %v1357 = vld [vmem:[#allocation4 + $0xd0] sm:$0xf]
    %v1358 = vld [vmem:[#allocation4 + $0xd4] sm:$0xf]
    %v1359 = vld [vmem:[#allocation4 + $0xd8] sm:$0xf]
    %v1360 = vld [vmem:[#allocation4 + $0xdc] sm:$0xf]
    %v1361 = vld [vmem:[#allocation4 + $0xe0] sm:$0xf]
    %v1362 = vld [vmem:[#allocation4 + $0xe4] sm:$0xf]
    %v1363 = vld [vmem:[#allocation4 + $0xe8] sm:$0xf]
    %v1364 = vld [vmem:[#allocation4 + $0xec] sm:$0xf]
    %v1365 = vld [vmem:[#allocation4 + $0xf0] sm:$0xf]
    %v1366 = vld [vmem:[#allocation4 + $0xf4] sm:$0xf]
    %v1367 = vld [vmem:[#allocation4 + $0xf8] sm:$0xf]
    %v1368 = vld [vmem:[#allocation4 + $0xfc] sm:$0xf]
    %v1369 = vld [vmem:[#allocation4 + $0x100] sm:$0xf]
    %v1370 = vld [vmem:[#allocation4 + $0x104] sm:$0xf]
    %v1371 = vld [vmem:[#allocation4 + $0x108] sm:$0xf]
    %v1372 = vld [vmem:[#allocation4 + $0x10c] sm:$0xf]
    %v1373 = vld [vmem:[#allocation4 + $0x110] sm:$0xf]
    %v1374 = vld [vmem:[#allocation4 + $0x114] sm:$0xf]
    %v1375 = vld [vmem:[#allocation4 + $0x118] sm:$0xf]
    %v1376 = vld [vmem:[#allocation4 + $0x11c] sm:$0xf]
    %v1377 = vld [vmem:[#allocation4 + $0x120] sm:$0xf]
    %v1378 = vld [vmem:[#allocation4 + $0x124] sm:$0xf]
    %v1379 = vld [vmem:[#allocation4 + $0x128] sm:$0xf]
    %v1380 = vld [vmem:[#allocation4 + $0x12c] sm:$0xf]
    %v1381 = vld [vmem:[#allocation4 + $0x130] sm:$0xf]
    %v1382 = vld [vmem:[#allocation4 + $0x134] sm:$0xf]
    %v1383 = vld [vmem:[#allocation4 + $0x138] sm:$0xf]
    %v1384 = vld [vmem:[#allocation4 + $0x13c] sm:$0xf]
    %v1385 = vld [vmem:[%s6] sm:$0x1]
    %v1387 = vlaneseq
    %v1388 = vshrl.u32 %v1387, 7
    %v1389 = vsub.s32 0, %v1388
    %v1390 = vrot.slane %v1385, %v1389
    %v1472 = vunpack.c.l.b16 %v1305
    %v1473 = vunpack.c.l.b16 %v1306
    %v1474 = vunpack.c.l.b16 %v1307
    %v1475 = vunpack.c.l.b16 %v1308
    %v1476 = vunpack.c.l.b16 %v1309
    %v1477 = vunpack.c.l.b16 %v1310
    %v1478 = vunpack.c.l.b16 %v1311
    %v1479 = vunpack.c.l.b16 %v1312
    %v1480 = vunpack.c.l.b16 %v1313
    %v1481 = vunpack.c.l.b16 %v1314
    %v1482 = vunpack.c.l.b16 %v1315
    %v1483 = vunpack.c.l.b16 %v1316
    %v1484 = vunpack.c.l.b16 %v1317
    %v1485 = vunpack.c.l.b16 %v1318
    %v1486 = vunpack.c.l.b16 %v1319
    %v1487 = vunpack.c.l.b16 %v1320
    %v1488 = vunpack.c.l.b16 %v1321
    %v1489 = vunpack.c.l.b16 %v1322
    %v1490 = vunpack.c.l.b16 %v1323
    %v1491 = vunpack.c.l.b16 %v1324
    %v1492 = vunpack.c.l.b16 %v1325
    %v1493 = vunpack.c.l.b16 %v1326
    %v1494 = vunpack.c.l.b16 %v1327
    %v1495 = vunpack.c.l.b16 %v1328
    %v1496 = vunpack.c.l.b16 %v1329
    %v1497 = vunpack.c.l.b16 %v1330
    %v1498 = vunpack.c.l.b16 %v1331
    %v1499 = vunpack.c.l.b16 %v1332
    %v1500 = vunpack.c.l.b16 %v1333
    %v1501 = vunpack.c.l.b16 %v1334
    %v1502 = vunpack.c.l.b16 %v1335
    %v1503 = vunpack.c.l.b16 %v1336
    %v1504 = vunpack.c.l.b16 %v1337
    %v1505 = vunpack.c.l.b16 %v1338
    %v1506 = vunpack.c.l.b16 %v1339
    %v1507 = vunpack.c.l.b16 %v1340
    %v1508 = vunpack.c.l.b16 %v1341
    %v1509 = vunpack.c.l.b16 %v1342
    %v1510 = vunpack.c.l.b16 %v1343
    %v1511 = vunpack.c.l.b16 %v1344
    %v1512 = vunpack.c.l.b16 %v1345
    %v1513 = vunpack.c.l.b16 %v1346
    %v1514 = vunpack.c.l.b16 %v1347
    %v1515 = vunpack.c.l.b16 %v1348
    %v1516 = vunpack.c.l.b16 %v1349
    %v1517 = vunpack.c.l.b16 %v1350
    %v1518 = vunpack.c.l.b16 %v1351
    %v1519 = vunpack.c.l.b16 %v1352
    %v1520 = vunpack.c.l.b16 %v1353
    %v1521 = vunpack.c.l.b16 %v1354
    %v1522 = vunpack.c.l.b16 %v1355
    %v1523 = vunpack.c.l.b16 %v1356
    %v1524 = vunpack.c.l.b16 %v1357
    %v1525 = vunpack.c.l.b16 %v1358
    %v1526 = vunpack.c.l.b16 %v1359
    %v1527 = vunpack.c.l.b16 %v1360
    %v1528 = vunpack.c.l.b16 %v1361
    %v1529 = vunpack.c.l.b16 %v1362
    %v1530 = vunpack.c.l.b16 %v1363
    %v1531 = vunpack.c.l.b16 %v1364
    %v1532 = vunpack.c.l.b16 %v1365
    %v1533 = vunpack.c.l.b16 %v1366
    %v1534 = vunpack.c.l.b16 %v1367
    %v1535 = vunpack.c.l.b16 %v1368
    %v1536 = vunpack.c.l.b16 %v1369
    %v1537 = vunpack.c.l.b16 %v1370
    %v1538 = vunpack.c.l.b16 %v1371
    %v1539 = vunpack.c.l.b16 %v1372
    %v1540 = vunpack.c.l.b16 %v1373
    %v1541 = vunpack.c.l.b16 %v1374
    %v1542 = vunpack.c.l.b16 %v1375
    %v1543 = vunpack.c.l.b16 %v1376
    %v1544 = vunpack.c.l.b16 %v1377
    %v1545 = vunpack.c.l.b16 %v1378
    %v1546 = vunpack.c.l.b16 %v1379
    %v1547 = vunpack.c.l.b16 %v1380
    %v1548 = vunpack.c.l.b16 %v1381
    %v1549 = vunpack.c.l.b16 %v1382
    %v1550 = vunpack.c.l.b16 %v1383
    %v1551 = vunpack.c.l.b16 %v1384
    %v1552 = vpack.c.b16 %v1473, %v1472
    %v1553 = vpack.c.b16 %v1475, %v1474
    %v1554 = vpack.c.b16 %v1477, %v1476
    %v1555 = vpack.c.b16 %v1479, %v1478
    %v1556 = vpack.c.b16 %v1481, %v1480
    %v1557 = vpack.c.b16 %v1483, %v1482
    %v1558 = vpack.c.b16 %v1485, %v1484
    %v1559 = vpack.c.b16 %v1487, %v1486
    %v1560 = vpack.c.b16 %v1489, %v1488
    %v1561 = vpack.c.b16 %v1491, %v1490
    %v1562 = vpack.c.b16 %v1493, %v1492
    %v1563 = vpack.c.b16 %v1495, %v1494
    %v1564 = vpack.c.b16 %v1497, %v1496
    %v1565 = vpack.c.b16 %v1499, %v1498
    %v1566 = vpack.c.b16 %v1501, %v1500
    %v1567 = vpack.c.b16 %v1503, %v1502
    %v1568 = vpack.c.b16 %v1505, %v1504
    %v1569 = vpack.c.b16 %v1507, %v1506
    %v1570 = vpack.c.b16 %v1509, %v1508
    %v1571 = vpack.c.b16 %v1511, %v1510
    %v1572 = vpack.c.b16 %v1513, %v1512
    %v1573 = vpack.c.b16 %v1515, %v1514
    %v1574 = vpack.c.b16 %v1517, %v1516
    %v1575 = vpack.c.b16 %v1519, %v1518
    %v1576 = vpack.c.b16 %v1521, %v1520
    %v1577 = vpack.c.b16 %v1523, %v1522
    %v1578 = vpack.c.b16 %v1525, %v1524
    %v1579 = vpack.c.b16 %v1527, %v1526
    %v1580 = vpack.c.b16 %v1529, %v1528
    %v1581 = vpack.c.b16 %v1531, %v1530
    %v1582 = vpack.c.b16 %v1533, %v1532
    %v1583 = vpack.c.b16 %v1535, %v1534
    %v1584 = vpack.c.b16 %v1537, %v1536
    %v1585 = vpack.c.b16 %v1539, %v1538
    %v1586 = vpack.c.b16 %v1541, %v1540
    %v1587 = vpack.c.b16 %v1543, %v1542
    %v1588 = vpack.c.b16 %v1545, %v1544
    %v1589 = vpack.c.b16 %v1547, %v1546
    %v1590 = vpack.c.b16 %v1549, %v1548
    %v1591 = vpack.c.b16 %v1551, %v1550
    %1632 = vmatprep.subr.bf16.mxu0 0
    %1633 = vmatpush1.bf16.msra.mxu0 %v1559
    %1634 = vmatprep.subr.bf16.mxu0 0
    %1635 = vmatpush1.bf16.msra.mxu0 %v1558
    %1636 = vmatprep.subr.bf16.mxu0 0
    %1637 = vmatpush1.bf16.msra.mxu0 %v1557
    %1638 = vmatprep.subr.bf16.mxu0 0
    %1639 = vmatpush1.bf16.msra.mxu0 %v1556
    %1640 = vmatprep.subr.bf16.mxu0 0
    %1641 = vmatpush1.bf16.msra.mxu0 %v1555
    %1642 = vmatprep.subr.bf16.mxu0 0
    %1643 = vmatpush1.bf16.msra.mxu0 %v1554
    %1644 = vmatprep.subr.bf16.mxu0 0
    %1645 = vmatpush1.bf16.msra.mxu0 %v1553
    %1646 = vmatprep.subr.bf16.mxu0 0
    %1647 = vmatpush1.bf16.msra.mxu0 %v1552
    %1648 = vmatprep.subr.bf16.mxu0 0
    %1649 = vmatpush2.bf16.msra.mxu0 %v1567
    %1650 = vmatprep.subr.bf16.mxu0 0
    %1651 = vmatpush2.bf16.msra.mxu0 %v1566
    %1652 = vmatprep.subr.bf16.mxu0 0
    %1653 = vmatpush2.bf16.msra.mxu0 %v1565
    %1654 = vmatprep.subr.bf16.mxu0 0
    %1655 = vmatpush2.bf16.msra.mxu0 %v1564
    %1656 = vmatprep.subr.bf16.mxu0 0
    %1657 = vmatpush2.bf16.msra.mxu0 %v1563
    %1658 = vmatprep.subr.bf16.mxu0 0
    %1659 = vmatpush2.bf16.msra.mxu0 %v1562
    %1660 = vmatprep.subr.bf16.mxu0 0
    %1661 = vmatpush2.bf16.msra.mxu0 %v1561
    %1662 = vmatprep.subr.bf16.mxu0 0
    %1663 = vmatpush2.bf16.msra.mxu0 %v1560
    %1664 = vmatprep.mubr.bf16.mxu0 %v1301
    %1665 = vmatmul.mubr.bf16.gmra.mxu0 %v1300
    %v1666 = vpop.f32.mrf.mxu0
    %v1667 = vadd.f32 %v1390, %v1666
    %v1668 = vpop.f32.mrf.mxu0
    %v1669 = vpop.f32.mrf.mxu0
    %v1670 = vadd.f32 %v1390, %v1669
    %v1671 = vpop.f32.mrf.mxu0
    %1672 = vdwg.mxu0
    %1673 = vmatprep.subr.bf16.mxu0 0
    %1674 = vmatpush1.bf16.msra.mxu0 %v1575
    %1675 = vmatprep.subr.bf16.mxu0 0
    %1676 = vmatpush1.bf16.msra.mxu0 %v1574
    %1677 = vmatprep.subr.bf16.mxu0 0
    %1678 = vmatpush1.bf16.msra.mxu0 %v1573
    %1679 = vmatprep.subr.bf16.mxu0 0
    %1680 = vmatpush1.bf16.msra.mxu0 %v1572
    %1681 = vmatprep.subr.bf16.mxu0 0
    %1682 = vmatpush1.bf16.msra.mxu0 %v1571
    %1683 = vmatprep.subr.bf16.mxu0 0
    %1684 = vmatpush1.bf16.msra.mxu0 %v1570
    %1685 = vmatprep.subr.bf16.mxu0 0
    %1686 = vmatpush1.bf16.msra.mxu0 %v1569
    %1687 = vmatprep.subr.bf16.mxu0 0
    %1688 = vmatpush1.bf16.msra.mxu0 %v1568
    %1689 = vmatprep.subr.bf16.mxu0 0
    %1690 = vmatpush2.bf16.msra.mxu0 %v1583
    %1691 = vmatprep.subr.bf16.mxu0 0
    %1692 = vmatpush2.bf16.msra.mxu0 %v1582
    %1693 = vmatprep.subr.bf16.mxu0 0
    %1694 = vmatpush2.bf16.msra.mxu0 %v1581
    %1695 = vmatprep.subr.bf16.mxu0 0
    %1696 = vmatpush2.bf16.msra.mxu0 %v1580
    %1697 = vmatprep.subr.bf16.mxu0 0
    %1698 = vmatpush2.bf16.msra.mxu0 %v1579
    %1699 = vmatprep.subr.bf16.mxu0 0
    %1700 = vmatpush2.bf16.msra.mxu0 %v1578
    %1701 = vmatprep.subr.bf16.mxu0 0
    %1702 = vmatpush2.bf16.msra.mxu0 %v1577
    %1703 = vmatprep.subr.bf16.mxu0 0
    %1704 = vmatpush2.bf16.msra.mxu0 %v1576
    %1705 = vmatprep.mubr.bf16.mxu0 %v1303
    %1706 = vmatmul.mubr.bf16.gmra.mxu0 %v1302
    %v1707 = vpop.f32.mrf.mxu0
    %v1708 = vadd.f32 %v1667, %v1707
    %v1709 = vpop.f32.mrf.mxu0
    %v1710 = vpop.f32.mrf.mxu0
    %v1711 = vadd.f32 %v1670, %v1710
    %v1712 = vpop.f32.mrf.mxu0
    %1713 = vdwg.mxu0
    %1714 = vmatprep.subr.bf16.mxu0 0
    %1715 = vmatpush1.bf16.msra.mxu0 %v1591
    %1716 = vmatprep.subr.bf16.mxu0 0
    %1717 = vmatpush1.bf16.msra.mxu0 %v1590
    %1718 = vmatprep.subr.bf16.mxu0 0
    %1719 = vmatpush1.bf16.msra.mxu0 %v1589
    %1720 = vmatprep.subr.bf16.mxu0 0
    %1721 = vmatpush1.bf16.msra.mxu0 %v1588
    %1722 = vmatprep.subr.bf16.mxu0 0
    %1723 = vmatpush1.bf16.msra.mxu0 %v1587
    %1724 = vmatprep.subr.bf16.mxu0 0
    %1725 = vmatpush1.bf16.msra.mxu0 %v1586
    %1726 = vmatprep.subr.bf16.mxu0 0
    %1727 = vmatpush1.bf16.msra.mxu0 %v1585
    %1728 = vmatprep.subr.bf16.mxu0 0
    %1729 = vmatpush1.bf16.msra.mxu0 %v1584
    %1730 = vmatprep.subr.bf16.mxu0 0
    %1731 = vmatpush2.bf16.msra.mxu0 0
    %1732 = vmatprep.subr.bf16.mxu0 0
    %1733 = vmatpush2.bf16.msra.mxu0 0
    %1734 = vmatprep.subr.bf16.mxu0 0
    %1735 = vmatpush2.bf16.msra.mxu0 0
    %1736 = vmatprep.subr.bf16.mxu0 0
    %1737 = vmatpush2.bf16.msra.mxu0 0
    %1738 = vmatprep.subr.bf16.mxu0 0
    %1739 = vmatpush2.bf16.msra.mxu0 0
    %1740 = vmatprep.subr.bf16.mxu0 0
    %1741 = vmatpush2.bf16.msra.mxu0 0
    %1742 = vmatprep.subr.bf16.mxu0 0
    %1743 = vmatpush2.bf16.msra.mxu0 0
    %1744 = vmatprep.subr.bf16.mxu0 0
    %1745 = vmatpush2.bf16.msra.mxu0 0
    %1746 = vmatprep.mubr.bf16.mxu0 0
    %1747 = vmatmul.mubr.bf16.gmra.mxu0 %v1304
    %v1748 = vpop.f32.mrf.mxu0
    %v1749 = vadd.f32 %v1708, %v1748
    %v1750 = vpop.f32.mrf.mxu0
    %v1751 = vpop.f32.mrf.mxu0
    %v1752 = vadd.f32 %v1711, %v1751
    %v1753 = vpop.f32.mrf.mxu0
    %1754 = vdwg.mxu0
    %v1755 = vmax.f32 %v1749, 0.0
    %v1756 = vmax.f32 %v1752, 0.0
    %v1757 = vpack.c.bf16 %v1756, %v1755
    %v1758 = vld [vmem:[#allocation6] sm:$0xff]
    %v1759 = vld [vmem:[#allocation6 + $0x8] sm:$0xff]
    %v1760 = vld [vmem:[#allocation6 + $0x10] sm:$0xff]
    %v1761 = vld [vmem:[#allocation6 + $0x18] sm:$0xff]
    %v1762 = vld [vmem:[#allocation6 + $0x20] sm:$0xff]
    %v1763 = vld [vmem:[#allocation6 + $0x28] sm:$0xff]
    %v1764 = vld [vmem:[#allocation6 + $0x30] sm:$0xff]
    %v1765 = vld [vmem:[#allocation6 + $0x38] sm:$0xff]
    %v1766 = vld [vmem:[#allocation6 + $0x40] sm:$0xff]
    %v1767 = vld [vmem:[#allocation6 + $0x48] sm:$0xff]
    %v1768 = vld [vmem:[#allocation6 + $0x50] sm:$0xff]
    %v1769 = vld [vmem:[#allocation6 + $0x58] sm:$0xff]
    %v1770 = vld [vmem:[#allocation6 + $0x60] sm:$0xff]
    %v1771 = vld [vmem:[#allocation6 + $0x68] sm:$0xff]
    %v1772 = vld [vmem:[#allocation6 + $0x70] sm:$0xff]
    %v1773 = vld [vmem:[#allocation6 + $0x78] sm:$0xff]
    %v1774 = vld [vmem:[#allocation6 + $0x80] sm:$0xff]
    %v1775 = vld [vmem:[#allocation6 + $0x88] sm:$0xff]
    %v1776 = vld [vmem:[#allocation6 + $0x90] sm:$0xff]
    %v1777 = vld [vmem:[#allocation6 + $0x98] sm:$0xff]
    %v1778 = vld [vmem:[#allocation6 + $0xa0] sm:$0xff]
    %v1779 = vld [vmem:[#allocation6 + $0xa8] sm:$0xff]
    %v1780 = vld [vmem:[#allocation6 + $0xb0] sm:$0xff]
    %v1781 = vld [vmem:[#allocation6 + $0xb8] sm:$0xff]
    %v1782 = vld [vmem:[#allocation6 + $0xc0] sm:$0xff]
    %v1783 = vld [vmem:[#allocation6 + $0xc8] sm:$0xff]
    %v1784 = vld [vmem:[#allocation6 + $0xd0] sm:$0xff]
    %v1785 = vld [vmem:[#allocation6 + $0xd8] sm:$0xff]
    %v1786 = vld [vmem:[#allocation6 + $0xe0] sm:$0xff]
    %v1787 = vld [vmem:[#allocation6 + $0xe8] sm:$0xff]
    %v1788 = vld [vmem:[#allocation6 + $0xf0] sm:$0xff]
    %v1789 = vld [vmem:[#allocation6 + $0xf8] sm:$0xff]
    %v1790 = vld [vmem:[#allocation6 + $0x100] sm:$0xff]
    %v1791 = vld [vmem:[#allocation6 + $0x108] sm:$0xff]
    %v1792 = vld [vmem:[#allocation6 + $0x110] sm:$0xff]
    %v1793 = vld [vmem:[#allocation6 + $0x118] sm:$0xff]
    %v1794 = vld [vmem:[#allocation6 + $0x120] sm:$0xff]
    %v1795 = vld [vmem:[#allocation6 + $0x128] sm:$0xff]
    %v1796 = vld [vmem:[#allocation6 + $0x130] sm:$0xff]
    %v1797 = vld [vmem:[#allocation6 + $0x138] sm:$0xff]
    %v1798 = vld [vmem:[#allocation6 + $0x140] sm:$0xff]
    %v1799 = vld [vmem:[#allocation6 + $0x148] sm:$0xff]
    %v1800 = vld [vmem:[#allocation6 + $0x150] sm:$0xff]
    %v1801 = vld [vmem:[#allocation6 + $0x158] sm:$0xff]
    %v1802 = vld [vmem:[#allocation6 + $0x160] sm:$0xff]
    %v1803 = vld [vmem:[#allocation6 + $0x168] sm:$0xff]
    %v1804 = vld [vmem:[#allocation6 + $0x170] sm:$0xff]
    %v1805 = vld [vmem:[#allocation6 + $0x178] sm:$0xff]
    %v1806 = vld [vmem:[#allocation6 + $0x180] sm:$0xff]
    %v1807 = vld [vmem:[#allocation6 + $0x188] sm:$0xff]
    %v1808 = vld [vmem:[#allocation6 + $0x190] sm:$0xff]
    %v1809 = vld [vmem:[#allocation6 + $0x198] sm:$0xff]
    %v1810 = vld [vmem:[#allocation6 + $0x1a0] sm:$0xff]
    %v1811 = vld [vmem:[#allocation6 + $0x1a8] sm:$0xff]
    %v1812 = vld [vmem:[#allocation6 + $0x1b0] sm:$0xff]
    %v1813 = vld [vmem:[#allocation6 + $0x1b8] sm:$0xff]
    %v1814 = vld [vmem:[#allocation6 + $0x1c0] sm:$0xff]
    %v1815 = vld [vmem:[#allocation6 + $0x1c8] sm:$0xff]
    %v1816 = vld [vmem:[#allocation6 + $0x1d0] sm:$0xff]
    %v1817 = vld [vmem:[#allocation6 + $0x1d8] sm:$0xff]
    %v1818 = vld [vmem:[#allocation6 + $0x1e0] sm:$0xff]
    %v1819 = vld [vmem:[#allocation6 + $0x1e8] sm:$0xff]
    %v1820 = vld [vmem:[#allocation6 + $0x1f0] sm:$0xff]
    %v1821 = vld [vmem:[#allocation6 + $0x1f8] sm:$0xff]
    %v1822 = vld [vmem:[%s8] sm:$0xff]
    %v1824 = vlaneseq
    %v1825 = vshrl.u32 %v1824, 7
    %v1826 = vsub.s32 0, %v1825
    %v1827 = vrot.slane %v1822, %v1826
    %v1828 = vlaneseq
    %v1829 = vshrl.u32 %v1828, 7
    %v1830 = vsub.s32 1, %v1829
    %v1831 = vrot.slane %v1822, %v1830
    %v1832 = vlaneseq
    %v1833 = vshrl.u32 %v1832, 7
    %v1834 = vsub.s32 2, %v1833
    %v1835 = vrot.slane %v1822, %v1834
    %v1836 = vlaneseq
    %v1837 = vshrl.u32 %v1836, 7
    %v1838 = vsub.s32 3, %v1837
    %v1839 = vrot.slane %v1822, %v1838
    %v1840 = vlaneseq
    %v1841 = vshrl.u32 %v1840, 7
    %v1842 = vsub.s32 4, %v1841
    %v1843 = vrot.slane %v1822, %v1842
    %v1844 = vlaneseq
    %v1845 = vshrl.u32 %v1844, 7
    %v1846 = vsub.s32 5, %v1845
    %v1847 = vrot.slane %v1822, %v1846
    %v1848 = vlaneseq
    %v1849 = vshrl.u32 %v1848, 7
    %v1850 = vsub.s32 6, %v1849
    %v1851 = vrot.slane %v1822, %v1850
    %v1852 = vlaneseq
    %v1853 = vshrl.u32 %v1852, 7
    %v1854 = vsub.s32 7, %v1853
    %v1855 = vrot.slane %v1822, %v1854
    %v1928 = vunpack.c.l.b16 %v1758
    %v1929 = vunpack.c.h.b16 %v1758
    %v1930 = vunpack.c.l.b16 %v1759
    %v1931 = vunpack.c.h.b16 %v1759
    %v1932 = vunpack.c.l.b16 %v1760
    %v1933 = vunpack.c.h.b16 %v1760
    %v1934 = vunpack.c.l.b16 %v1761
    %v1935 = vunpack.c.h.b16 %v1761
    %v1936 = vunpack.c.l.b16 %v1762
    %v1937 = vunpack.c.h.b16 %v1762
    %v1938 = vunpack.c.l.b16 %v1763
    %v1939 = vunpack.c.h.b16 %v1763
    %v1940 = vunpack.c.l.b16 %v1764
    %v1941 = vunpack.c.h.b16 %v1764
    %v1942 = vunpack.c.l.b16 %v1765
    %v1943 = vunpack.c.h.b16 %v1765
    %v1944 = vunpack.c.l.b16 %v1766
    %v1945 = vunpack.c.h.b16 %v1766
    %v1946 = vunpack.c.l.b16 %v1767
    %v1947 = vunpack.c.h.b16 %v1767
    %v1948 = vunpack.c.l.b16 %v1768
    %v1949 = vunpack.c.h.b16 %v1768
    %v1950 = vunpack.c.l.b16 %v1769
    %v1951 = vunpack.c.h.b16 %v1769
    %v1952 = vunpack.c.l.b16 %v1770
    %v1953 = vunpack.c.h.b16 %v1770
    %v1954 = vunpack.c.l.b16 %v1771
    %v1955 = vunpack.c.h.b16 %v1771
    %v1956 = vunpack.c.l.b16 %v1772
    %v1957 = vunpack.c.h.b16 %v1772
    %v1958 = vunpack.c.l.b16 %v1773
    %v1959 = vunpack.c.h.b16 %v1773
    %v1960 = vunpack.c.l.b16 %v1774
    %v1961 = vunpack.c.h.b16 %v1774
    %v1962 = vunpack.c.l.b16 %v1775
    %v1963 = vunpack.c.h.b16 %v1775
    %v1964 = vunpack.c.l.b16 %v1776
    %v1965 = vunpack.c.h.b16 %v1776
    %v1966 = vunpack.c.l.b16 %v1777
    %v1967 = vunpack.c.h.b16 %v1777
    %v1968 = vunpack.c.l.b16 %v1778
    %v1969 = vunpack.c.h.b16 %v1778
    %v1970 = vunpack.c.l.b16 %v1779
    %v1971 = vunpack.c.h.b16 %v1779
    %v1972 = vunpack.c.l.b16 %v1780
    %v1973 = vunpack.c.h.b16 %v1780
    %v1974 = vunpack.c.l.b16 %v1781
    %v1975 = vunpack.c.h.b16 %v1781
    %v1976 = vunpack.c.l.b16 %v1782
    %v1977 = vunpack.c.h.b16 %v1782
    %v1978 = vunpack.c.l.b16 %v1783
    %v1979 = vunpack.c.h.b16 %v1783
    %v1980 = vunpack.c.l.b16 %v1784
    %v1981 = vunpack.c.h.b16 %v1784
    %v1982 = vunpack.c.l.b16 %v1785
    %v1983 = vunpack.c.h.b16 %v1785
    %v1984 = vunpack.c.l.b16 %v1786
    %v1985 = vunpack.c.h.b16 %v1786
    %v1986 = vunpack.c.l.b16 %v1787
    %v1987 = vunpack.c.h.b16 %v1787
    %v1988 = vunpack.c.l.b16 %v1788
    %v1989 = vunpack.c.h.b16 %v1788
    %v1990 = vunpack.c.l.b16 %v1789
    %v1991 = vunpack.c.h.b16 %v1789
    %v1992 = vunpack.c.l.b16 %v1790
    %v1993 = vunpack.c.h.b16 %v1790
    %v1994 = vunpack.c.l.b16 %v1791
    %v1995 = vunpack.c.h.b16 %v1791
    %v1996 = vunpack.c.l.b16 %v1792
    %v1997 = vunpack.c.h.b16 %v1792
    %v1998 = vunpack.c.l.b16 %v1793
    %v1999 = vunpack.c.h.b16 %v1793
    %v2000 = vunpack.c.l.b16 %v1794
    %v2001 = vunpack.c.h.b16 %v1794
    %v2002 = vunpack.c.l.b16 %v1795
    %v2003 = vunpack.c.h.b16 %v1795
    %v2004 = vunpack.c.l.b16 %v1796
    %v2005 = vunpack.c.h.b16 %v1796
    %v2006 = vunpack.c.l.b16 %v1797
    %v2007 = vunpack.c.h.b16 %v1797
    %v2008 = vunpack.c.l.b16 %v1798
    %v2009 = vunpack.c.h.b16 %v1798
    %v2010 = vunpack.c.l.b16 %v1799
    %v2011 = vunpack.c.h.b16 %v1799
    %v2012 = vunpack.c.l.b16 %v1800
    %v2013 = vunpack.c.h.b16 %v1800
    %v2014 = vunpack.c.l.b16 %v1801
    %v2015 = vunpack.c.h.b16 %v1801
    %v2016 = vunpack.c.l.b16 %v1802
    %v2017 = vunpack.c.h.b16 %v1802
    %v2018 = vunpack.c.l.b16 %v1803
    %v2019 = vunpack.c.h.b16 %v1803
    %v2020 = vunpack.c.l.b16 %v1804
    %v2021 = vunpack.c.h.b16 %v1804
    %v2022 = vunpack.c.l.b16 %v1805
    %v2023 = vunpack.c.h.b16 %v1805
    %v2024 = vunpack.c.l.b16 %v1806
    %v2025 = vunpack.c.h.b16 %v1806
    %v2026 = vunpack.c.l.b16 %v1807
    %v2027 = vunpack.c.h.b16 %v1807
    %v2028 = vunpack.c.l.b16 %v1808
    %v2029 = vunpack.c.h.b16 %v1808
    %v2030 = vunpack.c.l.b16 %v1809
    %v2031 = vunpack.c.h.b16 %v1809
    %v2032 = vunpack.c.l.b16 %v1810
    %v2033 = vunpack.c.h.b16 %v1810
    %v2034 = vunpack.c.l.b16 %v1811
    %v2035 = vunpack.c.h.b16 %v1811
    %v2036 = vunpack.c.l.b16 %v1812
    %v2037 = vunpack.c.h.b16 %v1812
    %v2038 = vunpack.c.l.b16 %v1813
    %v2039 = vunpack.c.h.b16 %v1813
    %v2040 = vunpack.c.l.b16 %v1814
    %v2041 = vunpack.c.h.b16 %v1814
    %v2042 = vunpack.c.l.b16 %v1815
    %v2043 = vunpack.c.h.b16 %v1815
    %v2044 = vunpack.c.l.b16 %v1816
    %v2045 = vunpack.c.h.b16 %v1816
    %v2046 = vunpack.c.l.b16 %v1817
    %v2047 = vunpack.c.h.b16 %v1817
    %v2048 = vunpack.c.l.b16 %v1818
    %v2049 = vunpack.c.h.b16 %v1818
    %v2050 = vunpack.c.l.b16 %v1819
    %v2051 = vunpack.c.h.b16 %v1819
    %v2052 = vunpack.c.l.b16 %v1820
    %v2053 = vunpack.c.h.b16 %v1820
    %v2054 = vunpack.c.l.b16 %v1821
    %v2055 = vunpack.c.h.b16 %v1821
    %v2056 = vpack.c.b16 %v1936, %v1928
    %v2057 = vpack.c.b16 %v1937, %v1929
    %v2058 = vpack.c.b16 %v1938, %v1930
    %v2059 = vpack.c.b16 %v1939, %v1931
    %v2060 = vpack.c.b16 %v1940, %v1932
    %v2061 = vpack.c.b16 %v1941, %v1933
    %v2062 = vpack.c.b16 %v1942, %v1934
    %v2063 = vpack.c.b16 %v1943, %v1935
    %v2064 = vpack.c.b16 %v1952, %v1944
    %v2065 = vpack.c.b16 %v1953, %v1945
    %v2066 = vpack.c.b16 %v1954, %v1946
    %v2067 = vpack.c.b16 %v1955, %v1947
    %v2068 = vpack.c.b16 %v1956, %v1948
    %v2069 = vpack.c.b16 %v1957, %v1949
    %v2070 = vpack.c.b16 %v1958, %v1950
    %v2071 = vpack.c.b16 %v1959, %v1951
    %v2072 = vpack.c.b16 %v1968, %v1960
    %v2073 = vpack.c.b16 %v1969, %v1961
    %v2074 = vpack.c.b16 %v1970, %v1962
    %v2075 = vpack.c.b16 %v1971, %v1963
    %v2076 = vpack.c.b16 %v1972, %v1964
    %v2077 = vpack.c.b16 %v1973, %v1965
    %v2078 = vpack.c.b16 %v1974, %v1966
    %v2079 = vpack.c.b16 %v1975, %v1967
    %v2080 = vpack.c.b16 %v1984, %v1976
    %v2081 = vpack.c.b16 %v1985, %v1977
    %v2082 = vpack.c.b16 %v1986, %v1978
    %v2083 = vpack.c.b16 %v1987, %v1979
    %v2084 = vpack.c.b16 %v1988, %v1980
    %v2085 = vpack.c.b16 %v1989, %v1981
    %v2086 = vpack.c.b16 %v1990, %v1982
    %v2087 = vpack.c.b16 %v1991, %v1983
    %v2088 = vpack.c.b16 %v2000, %v1992
    %v2089 = vpack.c.b16 %v2001, %v1993
    %v2090 = vpack.c.b16 %v2002, %v1994
    %v2091 = vpack.c.b16 %v2003, %v1995
    %v2092 = vpack.c.b16 %v2004, %v1996
    %v2093 = vpack.c.b16 %v2005, %v1997
    %v2094 = vpack.c.b16 %v2006, %v1998
    %v2095 = vpack.c.b16 %v2007, %v1999
    %v2096 = vpack.c.b16 %v2016, %v2008
    %v2097 = vpack.c.b16 %v2017, %v2009
    %v2098 = vpack.c.b16 %v2018, %v2010
    %v2099 = vpack.c.b16 %v2019, %v2011
    %v2100 = vpack.c.b16 %v2020, %v2012
    %v2101 = vpack.c.b16 %v2021, %v2013
    %v2102 = vpack.c.b16 %v2022, %v2014
    %v2103 = vpack.c.b16 %v2023, %v2015
    %v2104 = vpack.c.b16 %v2032, %v2024
    %v2105 = vpack.c.b16 %v2033, %v2025
    %v2106 = vpack.c.b16 %v2034, %v2026
    %v2107 = vpack.c.b16 %v2035, %v2027
    %v2108 = vpack.c.b16 %v2036, %v2028
    %v2109 = vpack.c.b16 %v2037, %v2029
    %v2110 = vpack.c.b16 %v2038, %v2030
    %v2111 = vpack.c.b16 %v2039, %v2031
    %v2112 = vpack.c.b16 %v2048, %v2040
    %v2113 = vpack.c.b16 %v2049, %v2041
    %v2114 = vpack.c.b16 %v2050, %v2042
    %v2115 = vpack.c.b16 %v2051, %v2043
    %v2116 = vpack.c.b16 %v2052, %v2044
    %v2117 = vpack.c.b16 %v2053, %v2045
    %v2118 = vpack.c.b16 %v2054, %v2046
    %v2119 = vpack.c.b16 %v2055, %v2047
    %2184 = vmatprep.subr.bf16.mxu0 %v2113
    %2185 = vmatpush1.bf16.msra.mxu0 %v2112
    %2186 = vmatprep.subr.bf16.mxu0 %v2105
    %2187 = vmatpush1.bf16.msra.mxu0 %v2104
    %2188 = vmatprep.subr.bf16.mxu0 %v2097
    %2189 = vmatpush1.bf16.msra.mxu0 %v2096
    %2190 = vmatprep.subr.bf16.mxu0 %v2089
    %2191 = vmatpush1.bf16.msra.mxu0 %v2088
    %2192 = vmatprep.subr.bf16.mxu0 %v2081
    %2193 = vmatpush1.bf16.msra.mxu0 %v2080
    %2194 = vmatprep.subr.bf16.mxu0 %v2073
    %2195 = vmatpush1.bf16.msra.mxu0 %v2072
    %2196 = vmatprep.subr.bf16.mxu0 %v2065
    %2197 = vmatpush1.bf16.msra.mxu0 %v2064
    %2198 = vmatprep.subr.bf16.mxu0 %v2057
    %2199 = vmatpush1.bf16.msra.mxu0 %v2056
    %2200 = vmatprep.subr.bf16.mxu0 0
    %2201 = vmatpush2.bf16.msra.mxu0 0
    %2202 = vmatprep.subr.bf16.mxu0 0
    %2203 = vmatpush2.bf16.msra.mxu0 0
    %2204 = vmatprep.subr.bf16.mxu0 0
    %2205 = vmatpush2.bf16.msra.mxu0 0
    %2206 = vmatprep.subr.bf16.mxu0 0
    %2207 = vmatpush2.bf16.msra.mxu0 0
    %2208 = vmatprep.subr.bf16.mxu0 0
    %2209 = vmatpush2.bf16.msra.mxu0 0
    %2210 = vmatprep.subr.bf16.mxu0 0
    %2211 = vmatpush2.bf16.msra.mxu0 0
    %2212 = vmatprep.subr.bf16.mxu0 0
    %2213 = vmatpush2.bf16.msra.mxu0 0
    %2214 = vmatprep.subr.bf16.mxu0 0
    %2215 = vmatpush2.bf16.msra.mxu0 0
    %2216 = vmatprep.mubr.bf16.mxu0 0
    %2217 = vmatmul.mubr.bf16.gmra.mxu0 %v1757
    %v2218 = vpop.f32.mrf.mxu0
    %v2219 = vadd.f32 %v1827, %v2218
    %v2220 = vpop.f32.mrf.mxu0
    %v2221 = vadd.f32 %v1831, %v2220
    %v2222 = vpop.f32.mrf.mxu0
    %v2223 = vadd.f32 %v1827, %v2222
    %v2224 = vpop.f32.mrf.mxu0
    %v2225 = vadd.f32 %v1831, %v2224
    %2226 = vdwg.mxu0
    %2227 = vmatprep.subr.bf16.mxu0 %v2115
    %2228 = vmatpush1.bf16.msra.mxu0 %v2114
    %2229 = vmatprep.subr.bf16.mxu0 %v2107
    %2230 = vmatpush1.bf16.msra.mxu0 %v2106
    %2231 = vmatprep.subr.bf16.mxu0 %v2099
    %2232 = vmatpush1.bf16.msra.mxu0 %v2098
    %2233 = vmatprep.subr.bf16.mxu0 %v2091
    %2234 = vmatpush1.bf16.msra.mxu0 %v2090
    %2235 = vmatprep.subr.bf16.mxu0 %v2083
    %2236 = vmatpush1.bf16.msra.mxu0 %v2082
    %2237 = vmatprep.subr.bf16.mxu0 %v2075
    %2238 = vmatpush1.bf16.msra.mxu0 %v2074
    %2239 = vmatprep.subr.bf16.mxu0 %v2067
    %2240 = vmatpush1.bf16.msra.mxu0 %v2066
    %2241 = vmatprep.subr.bf16.mxu0 %v2059
    %2242 = vmatpush1.bf16.msra.mxu0 %v2058
    %2243 = vmatprep.subr.bf16.mxu0 0
    %2244 = vmatpush2.bf16.msra.mxu0 0
    %2245 = vmatprep.subr.bf16.mxu0 0
    %2246 = vmatpush2.bf16.msra.mxu0 0
    %2247 = vmatprep.subr.bf16.mxu0 0
    %2248 = vmatpush2.bf16.msra.mxu0 0
    %2249 = vmatprep.subr.bf16.mxu0 0
    %2250 = vmatpush2.bf16.msra.mxu0 0
    %2251 = vmatprep.subr.bf16.mxu0 0
    %2252 = vmatpush2.bf16.msra.mxu0 0
    %2253 = vmatprep.subr.bf16.mxu0 0
    %2254 = vmatpush2.bf16.msra.mxu0 0
    %2255 = vmatprep.subr.bf16.mxu0 0
    %2256 = vmatpush2.bf16.msra.mxu0 0
    %2257 = vmatprep.subr.bf16.mxu0 0
    %2258 = vmatpush2.bf16.msra.mxu0 0
    %2259 = vmatprep.mubr.bf16.mxu0 0
    %2260 = vmatmul.mubr.bf16.gmra.mxu0 %v1757
    %v2261 = vpop.f32.mrf.mxu0
    %v2262 = vadd.f32 %v1835, %v2261
    %v2263 = vpop.f32.mrf.mxu0
    %v2264 = vadd.f32 %v1839, %v2263
    %v2265 = vpop.f32.mrf.mxu0
    %v2266 = vadd.f32 %v1835, %v2265
    %v2267 = vpop.f32.mrf.mxu0
    %v2268 = vadd.f32 %v1839, %v2267
    %2269 = vdwg.mxu0
    %2270 = vmatprep.subr.bf16.mxu0 %v2117
    %2271 = vmatpush1.bf16.msra.mxu0 %v2116
    %2272 = vmatprep.subr.bf16.mxu0 %v2109
    %2273 = vmatpush1.bf16.msra.mxu0 %v2108
    %2274 = vmatprep.subr.bf16.mxu0 %v2101
    %2275 = vmatpush1.bf16.msra.mxu0 %v2100
    %2276 = vmatprep.subr.bf16.mxu0 %v2093
    %2277 = vmatpush1.bf16.msra.mxu0 %v2092
    %2278 = vmatprep.subr.bf16.mxu0 %v2085
    %2279 = vmatpush1.bf16.msra.mxu0 %v2084
    %2280 = vmatprep.subr.bf16.mxu0 %v2077
    %2281 = vmatpush1.bf16.msra.mxu0 %v2076
    %2282 = vmatprep.subr.bf16.mxu0 %v2069
    %2283 = vmatpush1.bf16.msra.mxu0 %v2068
    %2284 = vmatprep.subr.bf16.mxu0 %v2061
    %2285 = vmatpush1.bf16.msra.mxu0 %v2060
    %2286 = vmatprep.subr.bf16.mxu0 0
    %2287 = vmatpush2.bf16.msra.mxu0 0
    %2288 = vmatprep.subr.bf16.mxu0 0
    %2289 = vmatpush2.bf16.msra.mxu0 0
    %2290 = vmatprep.subr.bf16.mxu0 0
    %2291 = vmatpush2.bf16.msra.mxu0 0
    %2292 = vmatprep.subr.bf16.mxu0 0
    %2293 = vmatpush2.bf16.msra.mxu0 0
    %2294 = vmatprep.subr.bf16.mxu0 0
    %2295 = vmatpush2.bf16.msra.mxu0 0
    %2296 = vmatprep.subr.bf16.mxu0 0
    %2297 = vmatpush2.bf16.msra.mxu0 0
    %2298 = vmatprep.subr.bf16.mxu0 0
    %2299 = vmatpush2.bf16.msra.mxu0 0
    %2300 = vmatprep.subr.bf16.mxu0 0
    %2301 = vmatpush2.bf16.msra.mxu0 0
    %2302 = vmatprep.mubr.bf16.mxu0 0
    %2303 = vmatmul.mubr.bf16.gmra.mxu0 %v1757
    %v2304 = vpop.f32.mrf.mxu0
    %v2305 = vadd.f32 %v1843, %v2304
    %v2306 = vpop.f32.mrf.mxu0
    %v2307 = vadd.f32 %v1847, %v2306
    %v2308 = vpop.f32.mrf.mxu0
    %v2309 = vadd.f32 %v1843, %v2308
    %v2310 = vpop.f32.mrf.mxu0
    %v2311 = vadd.f32 %v1847, %v2310
    %2312 = vdwg.mxu0
    %2313 = vmatprep.subr.bf16.mxu0 %v2119
    %2314 = vmatpush1.bf16.msra.mxu0 %v2118
    %2315 = vmatprep.subr.bf16.mxu0 %v2111
    %2316 = vmatpush1.bf16.msra.mxu0 %v2110
    %2317 = vmatprep.subr.bf16.mxu0 %v2103
    %2318 = vmatpush1.bf16.msra.mxu0 %v2102
    %2319 = vmatprep.subr.bf16.mxu0 %v2095
    %2320 = vmatpush1.bf16.msra.mxu0 %v2094
    %2321 = vmatprep.subr.bf16.mxu0 %v2087
    %2322 = vmatpush1.bf16.msra.mxu0 %v2086
    %2323 = vmatprep.subr.bf16.mxu0 %v2079
    %2324 = vmatpush1.bf16.msra.mxu0 %v2078
    %2325 = vmatprep.subr.bf16.mxu0 %v2071
    %2326 = vmatpush1.bf16.msra.mxu0 %v2070
    %2327 = vmatprep.subr.bf16.mxu0 %v2063
    %2328 = vmatpush1.bf16.msra.mxu0 %v2062
    %2329 = vmatprep.subr.bf16.mxu0 0
    %2330 = vmatpush2.bf16.msra.mxu0 0
    %2331 = vmatprep.subr.bf16.mxu0 0
    %2332 = vmatpush2.bf16.msra.mxu0 0
    %2333 = vmatprep.subr.bf16.mxu0 0
    %2334 = vmatpush2.bf16.msra.mxu0 0
    %2335 = vmatprep.subr.bf16.mxu0 0
    %2336 = vmatpush2.bf16.msra.mxu0 0
    %2337 = vmatprep.subr.bf16.mxu0 0
    %2338 = vmatpush2.bf16.msra.mxu0 0
    %2339 = vmatprep.subr.bf16.mxu0 0
    %2340 = vmatpush2.bf16.msra.mxu0 0
    %2341 = vmatprep.subr.bf16.mxu0 0
    %2342 = vmatpush2.bf16.msra.mxu0 0
    %2343 = vmatprep.subr.bf16.mxu0 0
    %2344 = vmatpush2.bf16.msra.mxu0 0
    %2345 = vmatprep.mubr.bf16.mxu0 0
    %2346 = vmatmul.mubr.bf16.gmra.mxu0 %v1757
    %v2347 = vpop.f32.mrf.mxu0
    %v2348 = vadd.f32 %v1851, %v2347
    %v2349 = vpop.f32.mrf.mxu0
    %v2350 = vadd.f32 %v1855, %v2349
    %v2351 = vpop.f32.mrf.mxu0
    %v2352 = vadd.f32 %v1851, %v2351
    %v2353 = vpop.f32.mrf.mxu0
    %v2354 = vadd.f32 %v1855, %v2353
    %2355 = vdwg.mxu0
    %v2356 = vmax.f32 %v2219, 0.0
    %v2357 = vmax.f32 %v2221, 0.0
    %v2358 = vmax.f32 %v2262, 0.0
    %v2359 = vmax.f32 %v2264, 0.0
    %v2360 = vmax.f32 %v2305, 0.0
    %v2361 = vmax.f32 %v2307, 0.0
    %v2362 = vmax.f32 %v2348, 0.0
    %v2363 = vmax.f32 %v2350, 0.0
    %v2364 = vmax.f32 %v2223, 0.0
    %v2365 = vmax.f32 %v2225, 0.0
    %v2366 = vmax.f32 %v2266, 0.0
    %v2367 = vmax.f32 %v2268, 0.0
    %v2368 = vmax.f32 %v2309, 0.0
    %v2369 = vmax.f32 %v2311, 0.0
    %v2370 = vmax.f32 %v2352, 0.0
    %v2371 = vmax.f32 %v2354, 0.0
    %v2372 = vpack.c.bf16 %v2364, %v2356
    %v2373 = vpack.c.bf16 %v2365, %v2357
    %v2374 = vpack.c.bf16 %v2366, %v2358
    %v2375 = vpack.c.bf16 %v2367, %v2359
    %v2376 = vpack.c.bf16 %v2368, %v2360
    %v2377 = vpack.c.bf16 %v2369, %v2361
    %v2378 = vpack.c.bf16 %v2370, %v2362
    %v2379 = vpack.c.bf16 %v2371, %v2363
    %v2380 = vld [vmem:[#allocation7] sm:$0xf]
    %v2381 = vld [vmem:[#allocation7 + $0x4] sm:$0xf]
    %v2382 = vld [vmem:[#allocation7 + $0x8] sm:$0xf]
    %v2383 = vld [vmem:[#allocation7 + $0xc] sm:$0xf]
    %v2384 = vld [vmem:[#allocation7 + $0x10] sm:$0xf]
    %v2385 = vld [vmem:[#allocation7 + $0x14] sm:$0xf]
    %v2386 = vld [vmem:[#allocation7 + $0x18] sm:$0xf]
    %v2387 = vld [vmem:[#allocation7 + $0x1c] sm:$0xf]
    %v2388 = vld [vmem:[#allocation7 + $0x20] sm:$0xf]
    %v2389 = vld [vmem:[#allocation7 + $0x24] sm:$0xf]
    %v2390 = vld [vmem:[#allocation7 + $0x28] sm:$0xf]
    %v2391 = vld [vmem:[#allocation7 + $0x2c] sm:$0xf]
    %v2392 = vld [vmem:[#allocation7 + $0x30] sm:$0xf]
    %v2393 = vld [vmem:[#allocation7 + $0x34] sm:$0xf]
    %v2394 = vld [vmem:[#allocation7 + $0x38] sm:$0xf]
    %v2395 = vld [vmem:[#allocation7 + $0x3c] sm:$0xf]
    %v2396 = vld [vmem:[#allocation7 + $0x40] sm:$0xf]
    %v2397 = vld [vmem:[#allocation7 + $0x44] sm:$0xf]
    %v2398 = vld [vmem:[#allocation7 + $0x48] sm:$0xf]
    %v2399 = vld [vmem:[#allocation7 + $0x4c] sm:$0xf]
    %v2400 = vld [vmem:[#allocation7 + $0x50] sm:$0xf]
    %v2401 = vld [vmem:[#allocation7 + $0x54] sm:$0xf]
    %v2402 = vld [vmem:[#allocation7 + $0x58] sm:$0xf]
    %v2403 = vld [vmem:[#allocation7 + $0x5c] sm:$0xf]
    %v2404 = vld [vmem:[#allocation7 + $0x60] sm:$0xf]
    %v2405 = vld [vmem:[#allocation7 + $0x64] sm:$0xf]
    %v2406 = vld [vmem:[#allocation7 + $0x68] sm:$0xf]
    %v2407 = vld [vmem:[#allocation7 + $0x6c] sm:$0xf]
    %v2408 = vld [vmem:[#allocation7 + $0x70] sm:$0xf]
    %v2409 = vld [vmem:[#allocation7 + $0x74] sm:$0xf]
    %v2410 = vld [vmem:[#allocation7 + $0x78] sm:$0xf]
    %v2411 = vld [vmem:[#allocation7 + $0x7c] sm:$0xf]
    %v2412 = vld [vmem:[#allocation7 + $0x80] sm:$0xf]
    %v2413 = vld [vmem:[#allocation7 + $0x84] sm:$0xf]
    %v2414 = vld [vmem:[#allocation7 + $0x88] sm:$0xf]
    %v2415 = vld [vmem:[#allocation7 + $0x8c] sm:$0xf]
    %v2416 = vld [vmem:[#allocation7 + $0x90] sm:$0xf]
    %v2417 = vld [vmem:[#allocation7 + $0x94] sm:$0xf]
    %v2418 = vld [vmem:[#allocation7 + $0x98] sm:$0xf]
    %v2419 = vld [vmem:[#allocation7 + $0x9c] sm:$0xf]
    %v2420 = vld [vmem:[#allocation7 + $0xa0] sm:$0xf]
    %v2421 = vld [vmem:[#allocation7 + $0xa4] sm:$0xf]
    %v2422 = vld [vmem:[#allocation7 + $0xa8] sm:$0xf]
    %v2423 = vld [vmem:[#allocation7 + $0xac] sm:$0xf]
    %v2424 = vld [vmem:[#allocation7 + $0xb0] sm:$0xf]
    %v2425 = vld [vmem:[#allocation7 + $0xb4] sm:$0xf]
    %v2426 = vld [vmem:[#allocation7 + $0xb8] sm:$0xf]
    %v2427 = vld [vmem:[#allocation7 + $0xbc] sm:$0xf]
    %v2428 = vld [vmem:[#allocation7 + $0xc0] sm:$0xf]
    %v2429 = vld [vmem:[#allocation7 + $0xc4] sm:$0xf]
    %v2430 = vld [vmem:[#allocation7 + $0xc8] sm:$0xf]
    %v2431 = vld [vmem:[#allocation7 + $0xcc] sm:$0xf]
    %v2432 = vld [vmem:[#allocation7 + $0xd0] sm:$0xf]
    %v2433 = vld [vmem:[#allocation7 + $0xd4] sm:$0xf]
    %v2434 = vld [vmem:[#allocation7 + $0xd8] sm:$0xf]
    %v2435 = vld [vmem:[#allocation7 + $0xdc] sm:$0xf]
    %v2436 = vld [vmem:[#allocation7 + $0xe0] sm:$0xf]
    %v2437 = vld [vmem:[#allocation7 + $0xe4] sm:$0xf]
    %v2438 = vld [vmem:[#allocation7 + $0xe8] sm:$0xf]
    %v2439 = vld [vmem:[#allocation7 + $0xec] sm:$0xf]
    %v2440 = vld [vmem:[#allocation7 + $0xf0] sm:$0xf]
    %v2441 = vld [vmem:[#allocation7 + $0xf4] sm:$0xf]
    %v2442 = vld [vmem:[#allocation7 + $0xf8] sm:$0xf]
    %v2443 = vld [vmem:[#allocation7 + $0xfc] sm:$0xf]
    %v2444 = vld [vmem:[#allocation7 + $0x100] sm:$0xf]
    %v2445 = vld [vmem:[#allocation7 + $0x104] sm:$0xf]
    %v2446 = vld [vmem:[#allocation7 + $0x108] sm:$0xf]
    %v2447 = vld [vmem:[#allocation7 + $0x10c] sm:$0xf]
    %v2448 = vld [vmem:[#allocation7 + $0x110] sm:$0xf]
    %v2449 = vld [vmem:[#allocation7 + $0x114] sm:$0xf]
    %v2450 = vld [vmem:[#allocation7 + $0x118] sm:$0xf]
    %v2451 = vld [vmem:[#allocation7 + $0x11c] sm:$0xf]
    %v2452 = vld [vmem:[#allocation7 + $0x120] sm:$0xf]
    %v2453 = vld [vmem:[#allocation7 + $0x124] sm:$0xf]
    %v2454 = vld [vmem:[#allocation7 + $0x128] sm:$0xf]
    %v2455 = vld [vmem:[#allocation7 + $0x12c] sm:$0xf]
    %v2456 = vld [vmem:[#allocation7 + $0x130] sm:$0xf]
    %v2457 = vld [vmem:[#allocation7 + $0x134] sm:$0xf]
    %v2458 = vld [vmem:[#allocation7 + $0x138] sm:$0xf]
    %v2459 = vld [vmem:[#allocation7 + $0x13c] sm:$0xf]
    %v2460 = vld [vmem:[#allocation7 + $0x140] sm:$0xf]
    %v2461 = vld [vmem:[#allocation7 + $0x144] sm:$0xf]
    %v2462 = vld [vmem:[#allocation7 + $0x148] sm:$0xf]
    %v2463 = vld [vmem:[#allocation7 + $0x14c] sm:$0xf]
    %v2464 = vld [vmem:[#allocation7 + $0x150] sm:$0xf]
    %v2465 = vld [vmem:[#allocation7 + $0x154] sm:$0xf]
    %v2466 = vld [vmem:[#allocation7 + $0x158] sm:$0xf]
    %v2467 = vld [vmem:[#allocation7 + $0x15c] sm:$0xf]
    %v2468 = vld [vmem:[#allocation7 + $0x160] sm:$0xf]
    %v2469 = vld [vmem:[#allocation7 + $0x164] sm:$0xf]
    %v2470 = vld [vmem:[#allocation7 + $0x168] sm:$0xf]
    %v2471 = vld [vmem:[#allocation7 + $0x16c] sm:$0xf]
    %v2472 = vld [vmem:[#allocation7 + $0x170] sm:$0xf]
    %v2473 = vld [vmem:[#allocation7 + $0x174] sm:$0xf]
    %v2474 = vld [vmem:[#allocation7 + $0x178] sm:$0xf]
    %v2475 = vld [vmem:[#allocation7 + $0x17c] sm:$0xf]
    %v2476 = vld [vmem:[#allocation7 + $0x180] sm:$0xf]
    %v2477 = vld [vmem:[#allocation7 + $0x184] sm:$0xf]
    %v2478 = vld [vmem:[#allocation7 + $0x188] sm:$0xf]
    %v2479 = vld [vmem:[#allocation7 + $0x18c] sm:$0xf]
    %v2480 = vld [vmem:[#allocation7 + $0x190] sm:$0xf]
    %v2481 = vld [vmem:[#allocation7 + $0x194] sm:$0xf]
    %v2482 = vld [vmem:[#allocation7 + $0x198] sm:$0xf]
    %v2483 = vld [vmem:[#allocation7 + $0x19c] sm:$0xf]
    %v2484 = vld [vmem:[#allocation7 + $0x1a0] sm:$0xf]
    %v2485 = vld [vmem:[#allocation7 + $0x1a4] sm:$0xf]
    %v2486 = vld [vmem:[#allocation7 + $0x1a8] sm:$0xf]
    %v2487 = vld [vmem:[#allocation7 + $0x1ac] sm:$0xf]
    %v2488 = vld [vmem:[#allocation7 + $0x1b0] sm:$0xf]
    %v2489 = vld [vmem:[#allocation7 + $0x1b4] sm:$0xf]
    %v2490 = vld [vmem:[#allocation7 + $0x1b8] sm:$0xf]
    %v2491 = vld [vmem:[#allocation7 + $0x1bc] sm:$0xf]
    %v2492 = vld [vmem:[#allocation7 + $0x1c0] sm:$0xf]
    %v2493 = vld [vmem:[#allocation7 + $0x1c4] sm:$0xf]
    %v2494 = vld [vmem:[#allocation7 + $0x1c8] sm:$0xf]
    %v2495 = vld [vmem:[#allocation7 + $0x1cc] sm:$0xf]
    %v2496 = vld [vmem:[#allocation7 + $0x1d0] sm:$0xf]
    %v2497 = vld [vmem:[#allocation7 + $0x1d4] sm:$0xf]
    %v2498 = vld [vmem:[#allocation7 + $0x1d8] sm:$0xf]
    %v2499 = vld [vmem:[#allocation7 + $0x1dc] sm:$0xf]
    %v2500 = vld [vmem:[#allocation7 + $0x1e0] sm:$0xf]
    %v2501 = vld [vmem:[#allocation7 + $0x1e4] sm:$0xf]
    %v2502 = vld [vmem:[#allocation7 + $0x1e8] sm:$0xf]
    %v2503 = vld [vmem:[#allocation7 + $0x1ec] sm:$0xf]
    %v2504 = vld [vmem:[#allocation7 + $0x1f0] sm:$0xf]
    %v2505 = vld [vmem:[#allocation7 + $0x1f4] sm:$0xf]
    %v2506 = vld [vmem:[#allocation7 + $0x1f8] sm:$0xf]
    %v2507 = vld [vmem:[#allocation7 + $0x1fc] sm:$0xf]
    %v2508 = vld [vmem:[%s10] sm:$0x1]
    %v2510 = vlaneseq
    %v2511 = vshrl.u32 %v2510, 7
    %v2512 = vsub.s32 0, %v2511
    %v2513 = vrot.slane %v2508, %v2512
    %v2643 = vunpack.c.l.b16 %v2380
    %v2644 = vunpack.c.l.b16 %v2381
    %v2645 = vunpack.c.l.b16 %v2382
    %v2646 = vunpack.c.l.b16 %v2383
    %v2647 = vunpack.c.l.b16 %v2384
    %v2648 = vunpack.c.l.b16 %v2385
    %v2649 = vunpack.c.l.b16 %v2386
    %v2650 = vunpack.c.l.b16 %v2387
    %v2651 = vunpack.c.l.b16 %v2388
    %v2652 = vunpack.c.l.b16 %v2389
    %v2653 = vunpack.c.l.b16 %v2390
    %v2654 = vunpack.c.l.b16 %v2391
    %v2655 = vunpack.c.l.b16 %v2392
    %v2656 = vunpack.c.l.b16 %v2393
    %v2657 = vunpack.c.l.b16 %v2394
    %v2658 = vunpack.c.l.b16 %v2395
    %v2659 = vunpack.c.l.b16 %v2396
    %v2660 = vunpack.c.l.b16 %v2397
    %v2661 = vunpack.c.l.b16 %v2398
    %v2662 = vunpack.c.l.b16 %v2399
    %v2663 = vunpack.c.l.b16 %v2400
    %v2664 = vunpack.c.l.b16 %v2401
    %v2665 = vunpack.c.l.b16 %v2402
    %v2666 = vunpack.c.l.b16 %v2403
    %v2667 = vunpack.c.l.b16 %v2404
    %v2668 = vunpack.c.l.b16 %v2405
    %v2669 = vunpack.c.l.b16 %v2406
    %v2670 = vunpack.c.l.b16 %v2407
    %v2671 = vunpack.c.l.b16 %v2408
    %v2672 = vunpack.c.l.b16 %v2409
    %v2673 = vunpack.c.l.b16 %v2410
    %v2674 = vunpack.c.l.b16 %v2411
    %v2675 = vunpack.c.l.b16 %v2412
    %v2676 = vunpack.c.l.b16 %v2413
    %v2677 = vunpack.c.l.b16 %v2414
    %v2678 = vunpack.c.l.b16 %v2415
    %v2679 = vunpack.c.l.b16 %v2416
    %v2680 = vunpack.c.l.b16 %v2417
    %v2681 = vunpack.c.l.b16 %v2418
    %v2682 = vunpack.c.l.b16 %v2419
    %v2683 = vunpack.c.l.b16 %v2420
    %v2684 = vunpack.c.l.b16 %v2421
    %v2685 = vunpack.c.l.b16 %v2422
    %v2686 = vunpack.c.l.b16 %v2423
    %v2687 = vunpack.c.l.b16 %v2424
    %v2688 = vunpack.c.l.b16 %v2425
    %v2689 = vunpack.c.l.b16 %v2426
    %v2690 = vunpack.c.l.b16 %v2427
    %v2691 = vunpack.c.l.b16 %v2428
    %v2692 = vunpack.c.l.b16 %v2429
    %v2693 = vunpack.c.l.b16 %v2430
    %v2694 = vunpack.c.l.b16 %v2431
    %v2695 = vunpack.c.l.b16 %v2432
    %v2696 = vunpack.c.l.b16 %v2433
    %v2697 = vunpack.c.l.b16 %v2434
    %v2698 = vunpack.c.l.b16 %v2435
    %v2699 = vunpack.c.l.b16 %v2436
    %v2700 = vunpack.c.l.b16 %v2437
    %v2701 = vunpack.c.l.b16 %v2438
    %v2702 = vunpack.c.l.b16 %v2439
    %v2703 = vunpack.c.l.b16 %v2440
    %v2704 = vunpack.c.l.b16 %v2441
    %v2705 = vunpack.c.l.b16 %v2442
    %v2706 = vunpack.c.l.b16 %v2443
    %v2707 = vunpack.c.l.b16 %v2444
    %v2708 = vunpack.c.l.b16 %v2445
    %v2709 = vunpack.c.l.b16 %v2446
    %v2710 = vunpack.c.l.b16 %v2447
    %v2711 = vunpack.c.l.b16 %v2448
    %v2712 = vunpack.c.l.b16 %v2449
    %v2713 = vunpack.c.l.b16 %v2450
    %v2714 = vunpack.c.l.b16 %v2451
    %v2715 = vunpack.c.l.b16 %v2452
    %v2716 = vunpack.c.l.b16 %v2453
    %v2717 = vunpack.c.l.b16 %v2454
    %v2718 = vunpack.c.l.b16 %v2455
    %v2719 = vunpack.c.l.b16 %v2456
    %v2720 = vunpack.c.l.b16 %v2457
    %v2721 = vunpack.c.l.b16 %v2458
    %v2722 = vunpack.c.l.b16 %v2459
    %v2723 = vunpack.c.l.b16 %v2460
    %v2724 = vunpack.c.l.b16 %v2461
    %v2725 = vunpack.c.l.b16 %v2462
    %v2726 = vunpack.c.l.b16 %v2463
    %v2727 = vunpack.c.l.b16 %v2464
    %v2728 = vunpack.c.l.b16 %v2465
    %v2729 = vunpack.c.l.b16 %v2466
    %v2730 = vunpack.c.l.b16 %v2467
    %v2731 = vunpack.c.l.b16 %v2468
    %v2732 = vunpack.c.l.b16 %v2469
    %v2733 = vunpack.c.l.b16 %v2470
    %v2734 = vunpack.c.l.b16 %v2471
    %v2735 = vunpack.c.l.b16 %v2472
    %v2736 = vunpack.c.l.b16 %v2473
    %v2737 = vunpack.c.l.b16 %v2474
    %v2738 = vunpack.c.l.b16 %v2475
    %v2739 = vunpack.c.l.b16 %v2476
    %v2740 = vunpack.c.l.b16 %v2477
    %v2741 = vunpack.c.l.b16 %v2478
    %v2742 = vunpack.c.l.b16 %v2479
    %v2743 = vunpack.c.l.b16 %v2480
    %v2744 = vunpack.c.l.b16 %v2481
    %v2745 = vunpack.c.l.b16 %v2482
    %v2746 = vunpack.c.l.b16 %v2483
    %v2747 = vunpack.c.l.b16 %v2484
    %v2748 = vunpack.c.l.b16 %v2485
    %v2749 = vunpack.c.l.b16 %v2486
    %v2750 = vunpack.c.l.b16 %v2487
    %v2751 = vunpack.c.l.b16 %v2488
    %v2752 = vunpack.c.l.b16 %v2489
    %v2753 = vunpack.c.l.b16 %v2490
    %v2754 = vunpack.c.l.b16 %v2491
    %v2755 = vunpack.c.l.b16 %v2492
    %v2756 = vunpack.c.l.b16 %v2493
    %v2757 = vunpack.c.l.b16 %v2494
    %v2758 = vunpack.c.l.b16 %v2495
    %v2759 = vunpack.c.l.b16 %v2496
    %v2760 = vunpack.c.l.b16 %v2497
    %v2761 = vunpack.c.l.b16 %v2498
    %v2762 = vunpack.c.l.b16 %v2499
    %v2763 = vunpack.c.l.b16 %v2500
    %v2764 = vunpack.c.l.b16 %v2501
    %v2765 = vunpack.c.l.b16 %v2502
    %v2766 = vunpack.c.l.b16 %v2503
    %v2767 = vunpack.c.l.b16 %v2504
    %v2768 = vunpack.c.l.b16 %v2505
    %v2769 = vunpack.c.l.b16 %v2506
    %v2770 = vunpack.c.l.b16 %v2507
    %v2771 = vpack.c.b16 %v2644, %v2643
    %v2772 = vpack.c.b16 %v2646, %v2645
    %v2773 = vpack.c.b16 %v2648, %v2647
    %v2774 = vpack.c.b16 %v2650, %v2649
    %v2775 = vpack.c.b16 %v2652, %v2651
    %v2776 = vpack.c.b16 %v2654, %v2653
    %v2777 = vpack.c.b16 %v2656, %v2655
    %v2778 = vpack.c.b16 %v2658, %v2657
    %v2779 = vpack.c.b16 %v2660, %v2659
    %v2780 = vpack.c.b16 %v2662, %v2661
    %v2781 = vpack.c.b16 %v2664, %v2663
    %v2782 = vpack.c.b16 %v2666, %v2665
    %v2783 = vpack.c.b16 %v2668, %v2667
    %v2784 = vpack.c.b16 %v2670, %v2669
    %v2785 = vpack.c.b16 %v2672, %v2671
    %v2786 = vpack.c.b16 %v2674, %v2673
    %v2787 = vpack.c.b16 %v2676, %v2675
    %v2788 = vpack.c.b16 %v2678, %v2677
    %v2789 = vpack.c.b16 %v2680, %v2679
    %v2790 = vpack.c.b16 %v2682, %v2681
    %v2791 = vpack.c.b16 %v2684, %v2683
    %v2792 = vpack.c.b16 %v2686, %v2685
    %v2793 = vpack.c.b16 %v2688, %v2687
    %v2794 = vpack.c.b16 %v2690, %v2689
    %v2795 = vpack.c.b16 %v2692, %v2691
    %v2796 = vpack.c.b16 %v2694, %v2693
    %v2797 = vpack.c.b16 %v2696, %v2695
    %v2798 = vpack.c.b16 %v2698, %v2697
    %v2799 = vpack.c.b16 %v2700, %v2699
    %v2800 = vpack.c.b16 %v2702, %v2701
    %v2801 = vpack.c.b16 %v2704, %v2703
    %v2802 = vpack.c.b16 %v2706, %v2705
    %v2803 = vpack.c.b16 %v2708, %v2707
    %v2804 = vpack.c.b16 %v2710, %v2709
    %v2805 = vpack.c.b16 %v2712, %v2711
    %v2806 = vpack.c.b16 %v2714, %v2713
    %v2807 = vpack.c.b16 %v2716, %v2715
    %v2808 = vpack.c.b16 %v2718, %v2717
    %v2809 = vpack.c.b16 %v2720, %v2719
    %v2810 = vpack.c.b16 %v2722, %v2721
    %v2811 = vpack.c.b16 %v2724, %v2723
    %v2812 = vpack.c.b16 %v2726, %v2725
    %v2813 = vpack.c.b16 %v2728, %v2727
    %v2814 = vpack.c.b16 %v2730, %v2729
    %v2815 = vpack.c.b16 %v2732, %v2731
    %v2816 = vpack.c.b16 %v2734, %v2733
    %v2817 = vpack.c.b16 %v2736, %v2735
    %v2818 = vpack.c.b16 %v2738, %v2737
    %v2819 = vpack.c.b16 %v2740, %v2739
    %v2820 = vpack.c.b16 %v2742, %v2741
    %v2821 = vpack.c.b16 %v2744, %v2743
    %v2822 = vpack.c.b16 %v2746, %v2745
    %v2823 = vpack.c.b16 %v2748, %v2747
    %v2824 = vpack.c.b16 %v2750, %v2749
    %v2825 = vpack.c.b16 %v2752, %v2751
    %v2826 = vpack.c.b16 %v2754, %v2753
    %v2827 = vpack.c.b16 %v2756, %v2755
    %v2828 = vpack.c.b16 %v2758, %v2757
    %v2829 = vpack.c.b16 %v2760, %v2759
    %v2830 = vpack.c.b16 %v2762, %v2761
    %v2831 = vpack.c.b16 %v2764, %v2763
    %v2832 = vpack.c.b16 %v2766, %v2765
    %v2833 = vpack.c.b16 %v2768, %v2767
    %v2834 = vpack.c.b16 %v2770, %v2769
    %2899 = vmatprep.subr.bf16.mxu0 0
    %2900 = vmatpush1.bf16.msra.mxu0 %v2778
    %2901 = vmatprep.subr.bf16.mxu0 0
    %2902 = vmatpush1.bf16.msra.mxu0 %v2777
    %2903 = vmatprep.subr.bf16.mxu0 0
    %2904 = vmatpush1.bf16.msra.mxu0 %v2776
    %2905 = vmatprep.subr.bf16.mxu0 0
    %2906 = vmatpush1.bf16.msra.mxu0 %v2775
    %2907 = vmatprep.subr.bf16.mxu0 0
    %2908 = vmatpush1.bf16.msra.mxu0 %v2774
    %2909 = vmatprep.subr.bf16.mxu0 0
    %2910 = vmatpush1.bf16.msra.mxu0 %v2773
    %2911 = vmatprep.subr.bf16.mxu0 0
    %2912 = vmatpush1.bf16.msra.mxu0 %v2772
    %2913 = vmatprep.subr.bf16.mxu0 0
    %2914 = vmatpush1.bf16.msra.mxu0 %v2771
    %2915 = vmatprep.subr.bf16.mxu0 0
    %2916 = vmatpush2.bf16.msra.mxu0 %v2786
    %2917 = vmatprep.subr.bf16.mxu0 0
    %2918 = vmatpush2.bf16.msra.mxu0 %v2785
    %2919 = vmatprep.subr.bf16.mxu0 0
    %2920 = vmatpush2.bf16.msra.mxu0 %v2784
    %2921 = vmatprep.subr.bf16.mxu0 0
    %2922 = vmatpush2.bf16.msra.mxu0 %v2783
    %2923 = vmatprep.subr.bf16.mxu0 0
    %2924 = vmatpush2.bf16.msra.mxu0 %v2782
    %2925 = vmatprep.subr.bf16.mxu0 0
    %2926 = vmatpush2.bf16.msra.mxu0 %v2781
    %2927 = vmatprep.subr.bf16.mxu0 0
    %2928 = vmatpush2.bf16.msra.mxu0 %v2780
    %2929 = vmatprep.subr.bf16.mxu0 0
    %2930 = vmatpush2.bf16.msra.mxu0 %v2779
    %2931 = vmatprep.mubr.bf16.mxu0 %v2373
    %2932 = vmatmul.mubr.bf16.gmra.mxu0 %v2372
    %v2933 = vpop.f32.mrf.mxu0
    %v2934 = vadd.f32 %v2513, %v2933
    %v2935 = vpop.f32.mrf.mxu0
    %v2936 = vpop.f32.mrf.mxu0
    %v2937 = vadd.f32 %v2513, %v2936
    %v2938 = vpop.f32.mrf.mxu0
    %2939 = vdwg.mxu0
    %2940 = vmatprep.subr.bf16.mxu0 0
    %2941 = vmatpush1.bf16.msra.mxu0 %v2794
    %2942 = vmatprep.subr.bf16.mxu0 0
    %2943 = vmatpush1.bf16.msra.mxu0 %v2793
    %2944 = vmatprep.subr.bf16.mxu0 0
    %2945 = vmatpush1.bf16.msra.mxu0 %v2792
    %2946 = vmatprep.subr.bf16.mxu0 0
    %2947 = vmatpush1.bf16.msra.mxu0 %v2791
    %2948 = vmatprep.subr.bf16.mxu0 0
    %2949 = vmatpush1.bf16.msra.mxu0 %v2790
    %2950 = vmatprep.subr.bf16.mxu0 0
    %2951 = vmatpush1.bf16.msra.mxu0 %v2789
    %2952 = vmatprep.subr.bf16.mxu0 0
    %2953 = vmatpush1.bf16.msra.mxu0 %v2788
    %2954 = vmatprep.subr.bf16.mxu0 0
    %2955 = vmatpush1.bf16.msra.mxu0 %v2787
    %2956 = vmatprep.subr.bf16.mxu0 0
    %2957 = vmatpush2.bf16.msra.mxu0 %v2802
    %2958 = vmatprep.subr.bf16.mxu0 0
    %2959 = vmatpush2.bf16.msra.mxu0 %v2801
    %2960 = vmatprep.subr.bf16.mxu0 0
    %2961 = vmatpush2.bf16.msra.mxu0 %v2800
    %2962 = vmatprep.subr.bf16.mxu0 0
    %2963 = vmatpush2.bf16.msra.mxu0 %v2799
    %2964 = vmatprep.subr.bf16.mxu0 0
    %2965 = vmatpush2.bf16.msra.mxu0 %v2798
    %2966 = vmatprep.subr.bf16.mxu0 0
    %2967 = vmatpush2.bf16.msra.mxu0 %v2797
    %2968 = vmatprep.subr.bf16.mxu0 0
    %2969 = vmatpush2.bf16.msra.mxu0 %v2796
    %2970 = vmatprep.subr.bf16.mxu0 0
    %2971 = vmatpush2.bf16.msra.mxu0 %v2795
    %2972 = vmatprep.mubr.bf16.mxu0 %v2375
    %2973 = vmatmul.mubr.bf16.gmra.mxu0 %v2374
    %v2974 = vpop.f32.mrf.mxu0
    %v2975 = vadd.f32 %v2934, %v2974
    %v2976 = vpop.f32.mrf.mxu0
    %v2977 = vpop.f32.mrf.mxu0
    %v2978 = vadd.f32 %v2937, %v2977
    %v2979 = vpop.f32.mrf.mxu0
    %2980 = vdwg.mxu0
    %2981 = vmatprep.subr.bf16.mxu0 0
    %2982 = vmatpush1.bf16.msra.mxu0 %v2810
    %2983 = vmatprep.subr.bf16.mxu0 0
    %2984 = vmatpush1.bf16.msra.mxu0 %v2809
    %2985 = vmatprep.subr.bf16.mxu0 0
    %2986 = vmatpush1.bf16.msra.mxu0 %v2808
    %2987 = vmatprep.subr.bf16.mxu0 0
    %2988 = vmatpush1.bf16.msra.mxu0 %v2807
    %2989 = vmatprep.subr.bf16.mxu0 0
    %2990 = vmatpush1.bf16.msra.mxu0 %v2806
    %2991 = vmatprep.subr.bf16.mxu0 0
    %2992 = vmatpush1.bf16.msra.mxu0 %v2805
    %2993 = vmatprep.subr.bf16.mxu0 0
    %2994 = vmatpush1.bf16.msra.mxu0 %v2804
    %2995 = vmatprep.subr.bf16.mxu0 0
    %2996 = vmatpush1.bf16.msra.mxu0 %v2803
    %2997 = vmatprep.subr.bf16.mxu0 0
    %2998 = vmatpush2.bf16.msra.mxu0 %v2818
    %2999 = vmatprep.subr.bf16.mxu0 0
    %3000 = vmatpush2.bf16.msra.mxu0 %v2817
    %3001 = vmatprep.subr.bf16.mxu0 0
    %3002 = vmatpush2.bf16.msra.mxu0 %v2816
    %3003 = vmatprep.subr.bf16.mxu0 0
    %3004 = vmatpush2.bf16.msra.mxu0 %v2815
    %3005 = vmatprep.subr.bf16.mxu0 0
    %3006 = vmatpush2.bf16.msra.mxu0 %v2814
    %3007 = vmatprep.subr.bf16.mxu0 0
    %3008 = vmatpush2.bf16.msra.mxu0 %v2813
    %3009 = vmatprep.subr.bf16.mxu0 0
    %3010 = vmatpush2.bf16.msra.mxu0 %v2812
    %3011 = vmatprep.subr.bf16.mxu0 0
    %3012 = vmatpush2.bf16.msra.mxu0 %v2811
    %3013 = vmatprep.mubr.bf16.mxu0 %v2377
    %3014 = vmatmul.mubr.bf16.gmra.mxu0 %v2376
    %v3015 = vpop.f32.mrf.mxu0
    %v3016 = vadd.f32 %v2975, %v3015
    %v3017 = vpop.f32.mrf.mxu0
    %v3018 = vpop.f32.mrf.mxu0
    %v3019 = vadd.f32 %v2978, %v3018
    %v3020 = vpop.f32.mrf.mxu0
    %3021 = vdwg.mxu0
    %3022 = vmatprep.subr.bf16.mxu0 0
    %3023 = vmatpush1.bf16.msra.mxu0 %v2826
    %3024 = vmatprep.subr.bf16.mxu0 0
    %3025 = vmatpush1.bf16.msra.mxu0 %v2825
    %3026 = vmatprep.subr.bf16.mxu0 0
    %3027 = vmatpush1.bf16.msra.mxu0 %v2824
    %3028 = vmatprep.subr.bf16.mxu0 0
    %3029 = vmatpush1.bf16.msra.mxu0 %v2823
    %3030 = vmatprep.subr.bf16.mxu0 0
    %3031 = vmatpush1.bf16.msra.mxu0 %v2822
    %3032 = vmatprep.subr.bf16.mxu0 0
    %3033 = vmatpush1.bf16.msra.mxu0 %v2821
    %3034 = vmatprep.subr.bf16.mxu0 0
    %3035 = vmatpush1.bf16.msra.mxu0 %v2820
    %3036 = vmatprep.subr.bf16.mxu0 0
    %3037 = vmatpush1.bf16.msra.mxu0 %v2819
    %3038 = vmatprep.subr.bf16.mxu0 0
    %3039 = vmatpush2.bf16.msra.mxu0 %v2834
    %3040 = vmatprep.subr.bf16.mxu0 0
    %3041 = vmatpush2.bf16.msra.mxu0 %v2833
    %3042 = vmatprep.subr.bf16.mxu0 0
    %3043 = vmatpush2.bf16.msra.mxu0 %v2832
    %3044 = vmatprep.subr.bf16.mxu0 0
    %3045 = vmatpush2.bf16.msra.mxu0 %v2831
    %3046 = vmatprep.subr.bf16.mxu0 0
    %3047 = vmatpush2.bf16.msra.mxu0 %v2830
    %3048 = vmatprep.subr.bf16.mxu0 0
    %3049 = vmatpush2.bf16.msra.mxu0 %v2829
    %3050 = vmatprep.subr.bf16.mxu0 0
    %3051 = vmatpush2.bf16.msra.mxu0 %v2828
    %3052 = vmatprep.subr.bf16.mxu0 0
    %3053 = vmatpush2.bf16.msra.mxu0 %v2827
    %3054 = vmatprep.mubr.bf16.mxu0 %v2379
    %3055 = vmatmul.mubr.bf16.gmra.mxu0 %v2378
    %v3056 = vpop.f32.mrf.mxu0
    %v3057 = vadd.f32 %v3016, %v3056
    %v3058 = vpop.f32.mrf.mxu0
    %v3059 = vpop.f32.mrf.mxu0
    %v3060 = vadd.f32 %v3019, %v3059
    %v3061 = vpop.f32.mrf.mxu0
    %3062 = vdwg.mxu0
    %v3063 = vlaneseq
    %v3064 = vand.u32 %v3063, 127
    %vm3065 = vcmp.lt.s32.totalorder %v3064, 10
    %v3066 = vsel %vm3065, %v3057, -1e+30
    %v3067 = vsel %vm3065, %v3060, -1e+30
    %3068 = vmax.xlane.f32.xlu0 %v3066
    %v3069 = vpop.xlane.xlu0 %3068
    %3070 = vmax.xlane.f32.xlu0 %v3067
    %v3071 = vpop.xlane.xlu0 %3070
    %v3072 = vsub.f32 %v3066, %v3069
    %v3073 = vsub.f32 %v3067, %v3071
    %v3074 = vmul.f32 %v3072, 1.442695
    %v3075 = vpow.pop %v3074
    %v3076 = vmul.f32 %v3073, 1.442695
    %v3077 = vpow.pop %v3076
    %3078 = vadd.xlane.f32.xlu0 %v3075
    %v3079 = vpop.xlane.xlu0 %3078
    %3080 = vadd.xlane.f32.xlu0 %v3077
    %v3081 = vpop.xlane.xlu0 %3080
    %v3082 = vlog2.pop %v3079
    %v3083 = vmul.f32 %v3082, 0.6931472
    %v3084 = vlog2.pop %v3081
    %v3085 = vmul.f32 %v3084, 0.6931472
    %v3086 = vadd.f32 %v3069, %v3083
    %v3087 = vadd.f32 %v3071, %v3085
    %v3088 = vsub.f32 %v3066, %v3086
    %v3089 = vsub.f32 %v3067, %v3087
    %vm3090 = vcmp.eq.s32.totalorder %v3064, 10
    %v3091 = vsel %vm3090, %v3057, 0.0
    %v3092 = vsel %vm3090, %v3060, 0.0
    %3093 = vadd.xlane.f32.xlu0 %v3091
    %v3094 = vpop.xlane.xlu0 %3093
    %3095 = vadd.xlane.f32.xlu0 %v3092
    %v3096 = vpop.xlane.xlu0 %3095
    %v3097 = vtanh.pop %v3094
    %v3098 = vtanh.pop %v3096
    %v3099 = vsel %vm3090, %v3097, %v3088
    %v3100 = vsel %vm3090, %v3098, %v3089
    %3101 = vst [vmem:[%s11] sm:$0xff] %v3099
    %3102 = vst [vmem:[%s11 + $0x8] sm:$0xff] %v3100
    // Predicated region
    $region62: #{tictactoe_forward.1} parent=1 // pred_check
      _
    $region63: #{tictactoe_forward.1} parent=1 // pred_check_branch
      %3104 = sbr.rel (0) target = $region65
    $region64: #{tictactoe_forward.1} parent=1 // pred_region
      _
    $region65: #{tictactoe_forward.1} parent=1 // pred_fallthru
      _
    // Predicated region
    $region66: #{tictactoe_forward.1} parent=1 // pred_check
      _
    $region67: #{tictactoe_forward.1} parent=1 // pred_check_branch
      %3106 = sbr.rel (0) target = $region69
    $region68: #{tictactoe_forward.1} parent=1 // pred_region
      _
    $region69: #{tictactoe_forward.1} parent=1 // pred_fallthru
      _
    %3107 = vsyncpa [#allocation3], 1
    %3108 = vsyncpa [#allocation5], 1
    %3109 = vsyncpa [#allocation8], 1

</llo_original>
